<compile_context>
chip_gen: v6e
topology: v6e:2x2x1
jax: 0.10.0
libtpu: 0.0.40
codegen_flags: <defaults>
</compile_context>

<pallas_src>
import functools
import math

import jax
import jax.numpy as jnp
from jax.experimental import pallas as pl
from jax.experimental.pallas import tpu as pltpu


def _mha_kernel(x_ref, wqkv_ref, bqkv_ref, wproj_ref, bproj_ref, o_ref, *, n_head):
    # x_ref:     (Bt, T, E)  f32  — Bt packed batch elements per grid step
    # wqkv_ref:  (E, 3E)     bf16 — c_attn weight, [in, out] layout (grid-invariant)
    # bqkv_ref:  (1, 3E)     f32
    # wproj_ref: (E, E)      bf16 — c_proj weight, [in, out] layout (grid-invariant)
    # bproj_ref: (1, E)      f32
    # o_ref:     (Bt, T, E)  f32
    Bt, T, E = x_ref.shape
    D = E // n_head
    G = n_head * Bt
    scale = jnp.float32(1.0 / math.sqrt(D))

    # ---- c_attn on packed rows: (Bt*T, E) @ (E, 3E), bf16 in / f32 accumulate ----
    x2 = x_ref[...].astype(jnp.bfloat16).reshape(Bt * T, E)
    qkv = jnp.dot(x2, wqkv_ref[...], preferred_element_type=jnp.float32)
    qkv = qkv + bqkv_ref[...]                                   # (Bt*T, 3E) f32

    # Head split done once per tensor: (Bt*T, E) -> (n_head, Bt*T, D) -> (n_head*Bt, T, D)
    def to_heads(m):
        m = m.reshape(Bt * T, n_head, D)
        m = jnp.swapaxes(m, 0, 1)                               # (n_head, Bt*T, D)
        return m.reshape(G, T, D)

    # Fold the softmax scale into q before the score matmul (feedback item 1).
    q = to_heads((qkv[:, :E] * scale).astype(jnp.bfloat16))
    k = to_heads(qkv[:, E:2 * E].astype(jnp.bfloat16))
    v = to_heads(qkv[:, 2 * E:].astype(jnp.bfloat16))

    # ---- batched causal attention over the fused (head, batch) dim ----
    s = jnp.einsum("gqd,gkd->gqk", q, k,
                   preferred_element_type=jnp.float32)          # (G, T, T) f32
    row = jax.lax.broadcasted_iota(jnp.int32, (T, T), 0)
    col = jax.lax.broadcasted_iota(jnp.int32, (T, T), 1)
    s = jnp.where((row >= col)[None], s, jnp.float32(-1e30))

    # Numerically-stable softmax in f32 (v5e: no bf16 VPU/EUP); recip on the EUP slot.
    s = s - jnp.max(s, axis=-1, keepdims=True)
    p = jnp.exp(s)
    p = p * pl.reciprocal(jnp.sum(p, axis=-1, keepdims=True), approx=True)

    y = jnp.einsum("gqk,gkd->gqd", p.astype(jnp.bfloat16), v,
                   preferred_element_type=jnp.float32)          # (G, T, D) f32

    # Merge heads back to a lane-dense (Bt*T, E) bf16 slab, then one c_proj matmul
    # with full E-deep contraction (no per-head 32-lane concatenate).
    y = y.astype(jnp.bfloat16).reshape(n_head, Bt * T, D)
    y = jnp.swapaxes(y, 0, 1).reshape(Bt * T, E)
    out = jnp.dot(y, wproj_ref[...], preferred_element_type=jnp.float32)
    out = out + bproj_ref[...]
    o_ref[...] = out.reshape(Bt, T, E).astype(o_ref.dtype)


def _pick_block_b(B, T, target_rows=256):
    """Pack batch elements per grid step so projections see ~target_rows rows."""
    bt = max(1, min(B, max(1, target_rows // max(T, 1))))
    while B % bt:
        bt -= 1
    return bt


def _vmem_limit_bytes():
    # Generation-aware VMEM budget (v5e/v6e: 128 MiB physical, v7x: 64 MiB).
    try:
        cap = int(pltpu.get_tpu_info().vmem_capacity_bytes)
        return min((cap * 3) // 4, 100 * 1024 * 1024)
    except Exception:
        return 32 * 1024 * 1024  # safe on every generation


@functools.partial(jax.jit, static_argnames=("n_head",))
def mha_pallas(x, wqkv, bqkv, wproj, bproj, *, n_head):
    """Causal MHA forward.  x: [B, T, E] f32.  Returns [B, T, E] f32."""
    B, T, E = x.shape
    assert E % n_head == 0
    D = E // n_head

    # Weights are expected pre-cast to bf16 once outside jit; this is a no-op then.
    wqkv_bf = wqkv.astype(jnp.bfloat16)
    wproj_bf = wproj.astype(jnp.bfloat16)
    bqkv2 = bqkv.reshape(1, 3 * E).astype(jnp.float32)
    bproj2 = bproj.reshape(1, E).astype(jnp.float32)
    x = x.astype(jnp.float32)   # activations stay f32; kernel casts to bf16 on the VPU

    block_b = _pick_block_b(B, T)
    nb = B // block_b

    flops = B * (2 * T * E * 3 * E               # qkv projection
                 + n_head * 2 * (2 * T * T * D)  # q k^T and p @ v
                 + 2 * T * E * E)                # output projection
    transcendentals = B * n_head * T * T         # softmax exp
    bytes_accessed = (x.size * 4 + wqkv_bf.size * 2 + wproj_bf.size * 2
                      + bqkv2.size * 4 + bproj2.size * 4 + B * T * E * 4)

    return pl.pallas_call(
        functools.partial(_mha_kernel, n_head=n_head),
        out_shape=jax.ShapeDtypeStruct((B, T, E), jnp.float32),
        grid_spec=pltpu.PrefetchScalarGridSpec(
            num_scalar_prefetch=0,
            grid=(nb,),
            in_specs=[
                pl.BlockSpec((block_b, T, E), lambda b: (b, 0, 0)),  # x tile (f32)
                pl.BlockSpec((E, 3 * E), lambda b: (0, 0)),          # Wqkv (resident)
                pl.BlockSpec((1, 3 * E), lambda b: (0, 0)),          # bqkv
                pl.BlockSpec((E, E), lambda b: (0, 0)),              # Wproj (resident)
                pl.BlockSpec((1, E), lambda b: (0, 0)),              # bproj
            ],
            out_specs=pl.BlockSpec((block_b, T, E), lambda b: (b, 0, 0)),
        ),
        compiler_params=pltpu.CompilerParams(
            dimension_semantics=("parallel",),
            vmem_limit_bytes=_vmem_limit_bytes()),
        cost_estimate=pl.CostEstimate(flops=flops,
                                      transcendentals=transcendentals,
                                      bytes_accessed=bytes_accessed),
    )(x, wqkv_bf, bqkv2, wproj_bf, bproj2)


def _init_linear(key, fan_in, fan_out, dtype=jnp.float32):
    # Matches torch.nn.Linear default init: U(-1/sqrt(fan_in), 1/sqrt(fan_in)).
    kw, kb = jax.random.split(key)
    bound = 1.0 / math.sqrt(fan_in)
    # PyTorch stores weight as [out, in]; we keep [in, out] for row-major matmul.
    w = jax.random.uniform(kw, (fan_in, fan_out), dtype, -bound, bound)
    b = jax.random.uniform(kb, (fan_out,), dtype, -bound, bound)
    return w, b


def _mha_ref(x, wqkv, bqkv, wproj, bproj, n_head):
    # Pure-JAX reference of the PyTorch forward (f32).
    B, T, E = x.shape
    D = E // n_head
    qkv = x @ wqkv + bqkv
    q, k, v = jnp.split(qkv, 3, axis=-1)
    q = q.reshape(B, T, n_head, D).transpose(0, 2, 1, 3)
    k = k.reshape(B, T, n_head, D).transpose(0, 2, 1, 3)
    v = v.reshape(B, T, n_head, D).transpose(0, 2, 1, 3)
    s = jnp.einsum("bhid,bhjd->bhij", q, k) / math.sqrt(D)
    mask = jnp.tril(jnp.ones((T, T), dtype=bool))
    s = jnp.where(mask, s, -jnp.inf)
    p = jax.nn.softmax(s, axis=-1)
    y = jnp.einsum("bhij,bhjd->bhid", p, v)
    y = y.transpose(0, 2, 1, 3).reshape(B, T, E)
    return y @ wproj + bproj


if __name__ == "__main__":
    # Small config consistent with the module (E divisible by n_head, lane-dense
    # feature dim): batch=2, seq=16, embed=128, heads=4 (head_dim=32).
    batch, seq, embed, n_head = 2, 16, 128, 4

    key = jax.random.PRNGKey(0)
    kx, k1, k2 = jax.random.split(key, 3)

    x = jax.random.normal(kx, (batch, seq, embed), jnp.float32)
    wqkv, bqkv = _init_linear(k1, embed, 3 * embed)
    wproj, bproj = _init_linear(k2, embed, embed)

    # Weights pre-cast to bf16 once, outside jit (per perf review); x stays f32.
    wqkv_bf = wqkv.astype(jnp.bfloat16)
    wproj_bf = wproj.astype(jnp.bfloat16)

    out = mha_pallas(x, wqkv_bf, bqkv, wproj_bf, bproj, n_head=n_head)
    jax.block_until_ready(out)

    # Correctness check against the f32 reference (kernel uses bf16 MXU inputs,
    # so allow bf16-level tolerance).
    ref = _mha_ref(x, wqkv, bqkv, wproj, bproj, n_head)
    max_err = float(jnp.max(jnp.abs(out - ref)))
    assert jnp.allclose(out, ref, atol=2e-2, rtol=2e-2), (
        f"mismatch vs reference, max abs err = {max_err:.3e}")

    print("KERNEL_OK")
</pallas_src>

<mosaic_0001>
module attributes {stable_mosaic.version = 11 : i64} {
  func.func @_mha_kernel(%arg0: i32, %arg1: memref<2x16x128xf32, #tpu.memory_space<vmem>>, %arg2: memref<128x384xbf16, #tpu.memory_space<vmem>>, %arg3: memref<1x384xf32, #tpu.memory_space<vmem>>, %arg4: memref<128x128xbf16, #tpu.memory_space<vmem>>, %arg5: memref<1x128xf32, #tpu.memory_space<vmem>>, %arg6: memref<2x16x128xf32, #tpu.memory_space<vmem>>) attributes {dimension_semantics = [#tpu.dimension_semantics<parallel>], iteration_bounds = array<i64: 1>, scalar_prefetch = 0 : i64, scratch_operands = 0 : i64, tpu.core_type = #tpu.core_type<tc>, window_params = [{transform_indices = @transform_0, window_bounds = array<i64: 2, 16, 128>}, {pipeline_mode = #tpu.pipeline_mode<synchronous>, transform_indices = @transform_1, window_bounds = array<i64: 128, 384>}, {pipeline_mode = #tpu.pipeline_mode<synchronous>, transform_indices = @transform_2, window_bounds = array<i64: 1, 384>}, {pipeline_mode = #tpu.pipeline_mode<synchronous>, transform_indices = @transform_3, window_bounds = array<i64: 128, 128>}, {pipeline_mode = #tpu.pipeline_mode<synchronous>, transform_indices = @transform_4, window_bounds = array<i64: 1, 128>}, {transform_indices = @transform_5, window_bounds = array<i64: 2, 16, 128>}]} {
    %c0 = arith.constant 0 : index
    %c0_0 = arith.constant 0 : index
    %c0_1 = arith.constant 0 : index
    %0 = vector.load %arg1[%c0, %c0_0, %c0_1] : memref<2x16x128xf32, #tpu.memory_space<vmem>>, vector<2x16x128xf32>
    %1 = arith.truncf %0 : vector<2x16x128xf32> to vector<2x16x128xbf16>
    %2 = vector.shape_cast %1 : vector<2x16x128xbf16> to vector<32x128xbf16>
    %c0_2 = arith.constant 0 : index
    %c0_3 = arith.constant 0 : index
    %3 = vector.load %arg2[%c0_2, %c0_3] : memref<128x384xbf16, #tpu.memory_space<vmem>>, vector<128x384xbf16>
    %cst = arith.constant dense<0.000000e+00> : vector<32x384xf32>
    %4 = tpu.matmul %2, %3, %cst {dimension_numbers = #tpu.dot_dimension_numbers<[1], [0], [0], [1], [0, 0, 1, 1], [], []>} : vector<32x128xbf16>, vector<128x384xbf16>, vector<32x384xf32> -> vector<32x384xf32>
    %c0_4 = arith.constant 0 : index
    %c0_5 = arith.constant 0 : index
    %5 = vector.load %arg3[%c0_4, %c0_5] : memref<1x384xf32, #tpu.memory_space<vmem>>, vector<1x384xf32>
    %6 = vector.broadcast %5 : vector<1x384xf32> to vector<32x384xf32>
    %7 = arith.addf %4, %6 : vector<32x384xf32>
    %8 = vector.extract_strided_slice %7 {offsets = [0, 0], sizes = [32, 128], strides = [1, 1]} : vector<32x384xf32> to vector<32x128xf32>
    %cst_6 = arith.constant 0.176776692 : f32
    %9 = vector.broadcast %cst_6 : f32 to vector<32x128xf32>
    %10 = arith.mulf %8, %9 : vector<32x128xf32>
    %11 = arith.truncf %10 : vector<32x128xf32> to vector<32x128xbf16>
    %12 = vector.shape_cast %11 : vector<32x128xbf16> to vector<32x4x32xbf16>
    %13 = tpu.transpose %12, [1, 0, 2] : vector<32x4x32xbf16> -> vector<4x32x32xbf16>
    %14 = vector.shape_cast %13 : vector<4x32x32xbf16> to vector<8x16x32xbf16>
    %15 = vector.extract_strided_slice %7 {offsets = [0, 128], sizes = [32, 128], strides = [1, 1]} : vector<32x384xf32> to vector<32x128xf32>
    %16 = arith.truncf %15 : vector<32x128xf32> to vector<32x128xbf16>
    %17 = vector.shape_cast %16 : vector<32x128xbf16> to vector<32x4x32xbf16>
    %18 = tpu.transpose %17, [1, 0, 2] : vector<32x4x32xbf16> -> vector<4x32x32xbf16>
    %19 = vector.shape_cast %18 : vector<4x32x32xbf16> to vector<8x16x32xbf16>
    %20 = vector.extract_strided_slice %7 {offsets = [0, 256], sizes = [32, 128], strides = [1, 1]} : vector<32x384xf32> to vector<32x128xf32>
    %21 = arith.truncf %20 : vector<32x128xf32> to vector<32x128xbf16>
    %22 = vector.shape_cast %21 : vector<32x128xbf16> to vector<32x4x32xbf16>
    %23 = tpu.transpose %22, [1, 0, 2] : vector<32x4x32xbf16> -> vector<4x32x32xbf16>
    %24 = vector.shape_cast %23 : vector<4x32x32xbf16> to vector<8x16x32xbf16>
    "tpu.trace_start"() <{level = 10 : i32, message = "gqd,gkd->gqk"}> : () -> ()
    %cst_7 = arith.constant dense<0.000000e+00> : vector<8x16x16xf32>
    %25 = tpu.matmul %14, %19, %cst_7 {dimension_numbers = #tpu.dot_dimension_numbers<[2], [2], [1], [1], [0, 0, 0, 1, 1, 1], [0], [0]>} : vector<8x16x32xbf16>, vector<8x16x32xbf16>, vector<8x16x16xf32> -> vector<8x16x16xf32>
    "tpu.trace_stop"() : () -> ()
    %26 = tpu.iota {dimensions = array<i32: 0>} : vector<16x16xi32>
    %27 = tpu.iota {dimensions = array<i32: 1>} : vector<16x16xi32>
    %28 = arith.cmpi sge, %26, %27 : vector<16x16xi32>
    %29 = vector.shape_cast %28 : vector<16x16xi1> to vector<1x16x16xi1>
    %cst_8 = arith.constant -1.000000e+30 : f32
    %30 = vector.shape_cast %29 : vector<1x16x16xi1> to vector<1x16x16xi1>
    %31 = vector.broadcast %30 : vector<1x16x16xi1> to vector<8x16x16xi1>
    %32 = vector.broadcast %cst_8 : f32 to vector<8x16x16xf32>
    %33 = arith.select %31, %25, %32 : vector<8x16x16xi1>, vector<8x16x16xf32>
    %cst_9 = arith.constant dense<0xFF800000> : vector<8x16xf32>
    %34 = vector.multi_reduction <maximumf>, %33, %cst_9 [2] : vector<8x16x16xf32> to vector<8x16xf32>
    %35 = vector.shape_cast %34 : vector<8x16xf32> to vector<8x16x1xf32>
    %36 = vector.broadcast %35 : vector<8x16x1xf32> to vector<8x16x16xf32>
    %37 = arith.subf %33, %36 : vector<8x16x16xf32>
    %38 = math.exp %37 : vector<8x16x16xf32>
    %cst_10 = arith.constant dense<0.000000e+00> : vector<8x16xf32>
    %39 = vector.multi_reduction <add>, %38, %cst_10 [2] : vector<8x16x16xf32> to vector<8x16xf32>
    %40 = vector.shape_cast %39 : vector<8x16xf32> to vector<8x16x1xf32>
    %41 = tpu.reciprocal %40 {approx = true} : vector<8x16x1xf32> -> vector<8x16x1xf32>
    %42 = vector.broadcast %41 : vector<8x16x1xf32> to vector<8x16x16xf32>
    %43 = arith.mulf %38, %42 : vector<8x16x16xf32>
    %44 = arith.truncf %43 : vector<8x16x16xf32> to vector<8x16x16xbf16>
    "tpu.trace_start"() <{level = 10 : i32, message = "gqk,gkd->gqd"}> : () -> ()
    %cst_11 = arith.constant dense<0.000000e+00> : vector<8x16x32xf32>
    %45 = tpu.matmul %44, %24, %cst_11 {dimension_numbers = #tpu.dot_dimension_numbers<[2], [1], [1], [2], [0, 0, 0, 1, 1, 2], [0], [0]>} : vector<8x16x16xbf16>, vector<8x16x32xbf16>, vector<8x16x32xf32> -> vector<8x16x32xf32>
    "tpu.trace_stop"() : () -> ()
    %46 = arith.truncf %45 : vector<8x16x32xf32> to vector<8x16x32xbf16>
    %47 = vector.shape_cast %46 : vector<8x16x32xbf16> to vector<4x32x32xbf16>
    %48 = tpu.transpose %47, [1, 0, 2] : vector<4x32x32xbf16> -> vector<32x4x32xbf16>
    %49 = vector.shape_cast %48 : vector<32x4x32xbf16> to vector<32x128xbf16>
    %c0_12 = arith.constant 0 : index
    %c0_13 = arith.constant 0 : index
    %50 = vector.load %arg4[%c0_12, %c0_13] : memref<128x128xbf16, #tpu.memory_space<vmem>>, vector<128x128xbf16>
    %cst_14 = arith.constant dense<0.000000e+00> : vector<32x128xf32>
    %51 = tpu.matmul %49, %50, %cst_14 {dimension_numbers = #tpu.dot_dimension_numbers<[1], [0], [0], [1], [0, 0, 1, 1], [], []>} : vector<32x128xbf16>, vector<128x128xbf16>, vector<32x128xf32> -> vector<32x128xf32>
    %c0_15 = arith.constant 0 : index
    %c0_16 = arith.constant 0 : index
    %52 = vector.load %arg5[%c0_15, %c0_16] : memref<1x128xf32, #tpu.memory_space<vmem>>, vector<1x128xf32>
    %53 = vector.broadcast %52 : vector<1x128xf32> to vector<32x128xf32>
    %54 = arith.addf %51, %53 : vector<32x128xf32>
    %55 = vector.shape_cast %54 : vector<32x128xf32> to vector<2x16x128xf32>
    %c0_17 = arith.constant 0 : index
    %c0_18 = arith.constant 0 : index
    %c0_19 = arith.constant 0 : index
    %56 = vector.load %arg6[%c0_17, %c0_18, %c0_19] : memref<2x16x128xf32, #tpu.memory_space<vmem>>, vector<2x16x128xf32>
    tpu.vector_store %arg6[%c0_17, %c0_18, %c0_19], %55 {strides = array<i32>} : memref<2x16x128xf32, #tpu.memory_space<vmem>>, vector<2x16x128xf32>,
    return
  }
  func.func @transform_0(%arg0: i32) -> (i32, i32, i32) {
    %c0_i32 = arith.constant 0 : i32
    %c0_i32_0 = arith.constant 0 : i32
    %c0_i32_1 = arith.constant 0 : i32
    return %arg0, %c0_i32, %c0_i32_0 : i32, i32, i32
  }
  func.func @transform_1(%arg0: i32) -> (i32, i32) {
    %c0_i32 = arith.constant 0 : i32
    %c0_i32_0 = arith.constant 0 : i32
    %c0_i32_1 = arith.constant 0 : i32
    return %c0_i32, %c0_i32_0 : i32, i32
  }
  func.func @transform_2(%arg0: i32) -> (i32, i32) {
    %c0_i32 = arith.constant 0 : i32
    %c0_i32_0 = arith.constant 0 : i32
    %c0_i32_1 = arith.constant 0 : i32
    return %c0_i32, %c0_i32_0 : i32, i32
  }
  func.func @transform_3(%arg0: i32) -> (i32, i32) {
    %c0_i32 = arith.constant 0 : i32
    %c0_i32_0 = arith.constant 0 : i32
    %c0_i32_1 = arith.constant 0 : i32
    return %c0_i32, %c0_i32_0 : i32, i32
  }
  func.func @transform_4(%arg0: i32) -> (i32, i32) {
    %c0_i32 = arith.constant 0 : i32
    %c0_i32_0 = arith.constant 0 : i32
    %c0_i32_1 = arith.constant 0 : i32
    return %c0_i32, %c0_i32_0 : i32, i32
  }
  func.func @transform_5(%arg0: i32) -> (i32, i32, i32) {
    %c0_i32 = arith.constant 0 : i32
    %c0_i32_0 = arith.constant 0 : i32
    %c0_i32_1 = arith.constant 0 : i32
    return %arg0, %c0_i32, %c0_i32_0 : i32, i32, i32
  }
}

</mosaic_0001>

<llo_original>
// kernel: mha_pallas.1
$region0: #{mha_pallas.1}
  #allocation0 [shape = 'u32[]', space=smem, size = 0x4, offset = 0x4, fixed_abs, tag = 'smem constant byte address 0x4 - core index']
  #allocation1 [shape = 'u32[144,128]{1,0:T(1,128)}', space=vmem, size = 0x12000, scoped, tag = 'internal scratch']
  %s0 = inlined_call_operand.hbm [shape: f32[2,16,128], index: 0, kind: input, shape index: {}]
  %s1 = inlined_call_operand.hbm [shape: bf16[128,384], index: 1, kind: input, shape index: {}]
  %s2 = inlined_call_operand.vmem [shape: f32[1,384], index: 2, kind: input, shape index: {}]
  %s3 = inlined_call_operand.hbm [shape: bf16[128,128], index: 3, kind: input, shape index: {}]
  %s4 = inlined_call_operand.vmem [shape: f32[1,128], index: 4, kind: input, shape index: {}]
  %s5 = inlined_call_operand.hbm [shape: f32[2,16,128], index: 5, kind: output, shape index: {}]
  %s6 = sld [smem:[#allocation0]]
  $region42: #{mha_pallas.1} parent=0
    _
  %s8 = ssub.s32 1, %s6
  %s9 = scalar_select 0, %s8, %s6
  $region1: #{mha_pallas.1} parent=0
    #allocation2 [shape = 'u8[16384]{0}', space=vmem, size = 0x4000, scoped, tag = 'input window, operand 0, single buffered']
    #allocation3 [shape = 's32[1]{0}', space=sflag, size = 0x4, scoped, tag = 'scoped memory for mha_pallas.1']
    #allocation4 [shape = 's32[1]{0}', space=sflag, size = 0x4, scoped, tag = 'scoped memory for mha_pallas.1']
    #allocation5 [shape = 'u8[98304]{0}', space=vmem, size = 0x18000, scoped, tag = 'input window, operand 1, single buffered']
    #allocation6 [shape = 's32[1]{0}', space=sflag, size = 0x4, scoped, tag = 'scoped memory for mha_pallas.1']
    #allocation7 [shape = 'u8[32768]{0}', space=vmem, size = 0x8000, scoped, tag = 'input window, operand 3, single buffered']
    #allocation8 [shape = 'u8[16384]{0}', space=vmem, size = 0x4000, scoped, tag = 'output window, operand 0, single buffered']
    %10 = vsyncpa [#allocation3], 0
    %11 = vsyncpa [#allocation6], 0
    %12 = vsyncpa [#allocation4], 0
    // Predicated region
    $region2: #{mha_pallas.1} parent=1 // pred_check
      _
    $region3: #{mha_pallas.1} parent=1 // pred_check_branch
      %14 = sbr.rel (0) target = $region5
    $region4: #{mha_pallas.1} parent=1 // pred_region
      %s16 = ssub.s32 512, 512
      %17 = vsyncadd [#allocation3], %s16
      %s18 = sshll.u32 [#allocation2], 4
      %s19 = int_to_ptr.vmem [resolvable:$true] %s18
      %24 = dma.hbm_to_vmem [thread:$0]  %s0, 512, %s19, [#allocation3], 128, 128, 8
    $region5: #{mha_pallas.1} parent=1 // pred_fallthru
      _
    // Predicated region
    $region6: #{mha_pallas.1} parent=1 // pred_check
      _
    $region7: #{mha_pallas.1} parent=1 // pred_check_branch
      %26 = sbr.rel (0) target = $region9
    $region8: #{mha_pallas.1} parent=1 // pred_region
      %s28 = ssub.s32 3072, 3072
      %29 = vsyncadd [#allocation6], %s28
      %s30 = sshll.u32 [#allocation5], 4
      %s31 = int_to_ptr.vmem [resolvable:$true] %s30
      %36 = dma.hbm_to_vmem [thread:$0]  %s1, 3072, %s31, [#allocation6], 192, 192, 12
    $region9: #{mha_pallas.1} parent=1 // pred_fallthru
      _
    // Predicated region
    $region10: #{mha_pallas.1} parent=1 // pred_check
      _
    $region11: #{mha_pallas.1} parent=1 // pred_check_branch
      %38 = sbr.rel (0) target = $region13
    $region12: #{mha_pallas.1} parent=1 // pred_region
      _
    $region13: #{mha_pallas.1} parent=1 // pred_fallthru
      _
    // Predicated region
    $region14: #{mha_pallas.1} parent=1 // pred_check
      _
    $region15: #{mha_pallas.1} parent=1 // pred_check_branch
      %40 = sbr.rel (0) target = $region17
    $region16: #{mha_pallas.1} parent=1 // pred_region
      %s42 = ssub.s32 1024, 1024
      %43 = vsyncadd [#allocation6], %s42
      %s44 = sshll.u32 [#allocation7], 4
      %s45 = int_to_ptr.vmem [resolvable:$true] %s44
      %50 = dma.hbm_to_vmem [thread:$0]  %s3, 1024, %s45, [#allocation6], 64, 64, 4
    $region17: #{mha_pallas.1} parent=1 // pred_fallthru
      _
    // Predicated region
    $region18: #{mha_pallas.1} parent=1 // pred_check
      _
    $region19: #{mha_pallas.1} parent=1 // pred_check_branch
      %52 = sbr.rel (0) target = $region21
    $region20: #{mha_pallas.1} parent=1 // pred_region
      _
    $region21: #{mha_pallas.1} parent=1 // pred_fallthru
      _
    // Predicated region
    $region22: #{mha_pallas.1} parent=1 // pred_check
      _
    $region23: #{mha_pallas.1} parent=1 // pred_check_branch
      %54 = sbr.rel (0) target = $region25
    $region24: #{mha_pallas.1} parent=1 // pred_region
      %55 = dma.done [#allocation3], 512
    $region25: #{mha_pallas.1} parent=1 // pred_fallthru
      _
    // Predicated region
    $region26: #{mha_pallas.1} parent=1 // pred_check
      _
    $region27: #{mha_pallas.1} parent=1 // pred_check_branch
      %57 = sbr.rel (0) target = $region29
    $region28: #{mha_pallas.1} parent=1 // pred_region
      %58 = dma.done [#allocation6], 3072
    $region29: #{mha_pallas.1} parent=1 // pred_fallthru
      _
    // Predicated region
    $region30: #{mha_pallas.1} parent=1 // pred_check
      _
    $region31: #{mha_pallas.1} parent=1 // pred_check_branch
      %60 = sbr.rel (0) target = $region33
    $region32: #{mha_pallas.1} parent=1 // pred_region
      %61 = dma.done [#allocation6], 1024
    $region33: #{mha_pallas.1} parent=1 // pred_fallthru
      _
    %v63 = vld [vmem:[#allocation2] sm:$0xff]
    %v64 = vld [vmem:[#allocation2 + $0x8] sm:$0xff]
    %v65 = vld [vmem:[#allocation2 + $0x10] sm:$0xff]
    %v66 = vld [vmem:[#allocation2 + $0x18] sm:$0xff]
    %v67 = vpack.c.bf16 %v64, %v63
    %v68 = vpack.c.bf16 %v66, %v65
    %v69 = vld [vmem:[#allocation5] sm:$0xff]
    %v70 = vld [vmem:[#allocation5 + $0x8] sm:$0xf]
    %v71 = vld [vmem:[#allocation5 + $0xc] sm:$0xff]
    %v72 = vld [vmem:[#allocation5 + $0x14] sm:$0xf]
    %v73 = vld [vmem:[#allocation5 + $0x18] sm:$0xff]
    %v74 = vld [vmem:[#allocation5 + $0x20] sm:$0xf]
    %v75 = vld [vmem:[#allocation5 + $0x24] sm:$0xff]
    %v76 = vld [vmem:[#allocation5 + $0x2c] sm:$0xf]
    %v77 = vld [vmem:[#allocation5 + $0x30] sm:$0xff]
    %v78 = vld [vmem:[#allocation5 + $0x38] sm:$0xf]
    %v79 = vld [vmem:[#allocation5 + $0x3c] sm:$0xff]
    %v80 = vld [vmem:[#allocation5 + $0x44] sm:$0xf]
    %v81 = vld [vmem:[#allocation5 + $0x48] sm:$0xff]
    %v82 = vld [vmem:[#allocation5 + $0x50] sm:$0xf]
    %v83 = vld [vmem:[#allocation5 + $0x54] sm:$0xff]
    %v84 = vld [vmem:[#allocation5 + $0x5c] sm:$0xf]
    %v85 = vld [vmem:[#allocation5 + $0x60] sm:$0xff]
    %v86 = vld [vmem:[#allocation5 + $0x68] sm:$0xf]
    %v87 = vld [vmem:[#allocation5 + $0x6c] sm:$0xff]
    %v88 = vld [vmem:[#allocation5 + $0x74] sm:$0xf]
    %v89 = vld [vmem:[#allocation5 + $0x78] sm:$0xff]
    %v90 = vld [vmem:[#allocation5 + $0x80] sm:$0xf]
    %v91 = vld [vmem:[#allocation5 + $0x84] sm:$0xff]
    %v92 = vld [vmem:[#allocation5 + $0x8c] sm:$0xf]
    %v93 = vld [vmem:[#allocation5 + $0x90] sm:$0xff]
    %v94 = vld [vmem:[#allocation5 + $0x98] sm:$0xf]
    %v95 = vld [vmem:[#allocation5 + $0x9c] sm:$0xff]
    %v96 = vld [vmem:[#allocation5 + $0xa4] sm:$0xf]
    %v97 = vld [vmem:[#allocation5 + $0xa8] sm:$0xff]
    %v98 = vld [vmem:[#allocation5 + $0xb0] sm:$0xf]
    %v99 = vld [vmem:[#allocation5 + $0xb4] sm:$0xff]
    %v100 = vld [vmem:[#allocation5 + $0xbc] sm:$0xf]
    %v101 = vld [vmem:[%s2] sm:$0x7]
    %v103 = vlaneseq
    %v104 = vshrl.u32 %v103, 7
    %v105 = vsub.s32 0, %v104
    %v106 = vrot.slane %v101, %v105
    %v107 = vlaneseq
    %v108 = vshrl.u32 %v107, 7
    %v109 = vsub.s32 1, %v108
    %v110 = vrot.slane %v101, %v109
    %v111 = vlaneseq
    %v112 = vshrl.u32 %v111, 7
    %v113 = vsub.s32 2, %v112
    %v114 = vrot.slane %v101, %v113
    %v150 = vunpack.c.l.b16 %v69
    %v151 = vunpack.c.h.b16 %v69
    %v152 = vunpack.c.l.b16 %v70
    %v153 = vunpack.c.l.b16 %v71
    %v154 = vunpack.c.h.b16 %v71
    %v155 = vunpack.c.l.b16 %v72
    %v156 = vunpack.c.l.b16 %v73
    %v157 = vunpack.c.h.b16 %v73
    %v158 = vunpack.c.l.b16 %v74
    %v159 = vunpack.c.l.b16 %v75
    %v160 = vunpack.c.h.b16 %v75
    %v161 = vunpack.c.l.b16 %v76
    %v162 = vunpack.c.l.b16 %v77
    %v163 = vunpack.c.h.b16 %v77
    %v164 = vunpack.c.l.b16 %v78
    %v165 = vunpack.c.l.b16 %v79
    %v166 = vunpack.c.h.b16 %v79
    %v167 = vunpack.c.l.b16 %v80
    %v168 = vunpack.c.l.b16 %v81
    %v169 = vunpack.c.h.b16 %v81
    %v170 = vunpack.c.l.b16 %v82
    %v171 = vunpack.c.l.b16 %v83
    %v172 = vunpack.c.h.b16 %v83
    %v173 = vunpack.c.l.b16 %v84
    %v174 = vunpack.c.l.b16 %v85
    %v175 = vunpack.c.h.b16 %v85
    %v176 = vunpack.c.l.b16 %v86
    %v177 = vunpack.c.l.b16 %v87
    %v178 = vunpack.c.h.b16 %v87
    %v179 = vunpack.c.l.b16 %v88
    %v180 = vunpack.c.l.b16 %v89
    %v181 = vunpack.c.h.b16 %v89
    %v182 = vunpack.c.l.b16 %v90
    %v183 = vunpack.c.l.b16 %v91
    %v184 = vunpack.c.h.b16 %v91
    %v185 = vunpack.c.l.b16 %v92
    %v186 = vunpack.c.l.b16 %v93
    %v187 = vunpack.c.h.b16 %v93
    %v188 = vunpack.c.l.b16 %v94
    %v189 = vunpack.c.l.b16 %v95
    %v190 = vunpack.c.h.b16 %v95
    %v191 = vunpack.c.l.b16 %v96
    %v192 = vunpack.c.l.b16 %v97
    %v193 = vunpack.c.h.b16 %v97
    %v194 = vunpack.c.l.b16 %v98
    %v195 = vunpack.c.l.b16 %v99
    %v196 = vunpack.c.h.b16 %v99
    %v197 = vunpack.c.l.b16 %v100
    %v198 = vpack.c.b16 %v153, %v150
    %v199 = vpack.c.b16 %v154, %v151
    %v200 = vpack.c.b16 %v155, %v152
    %v201 = vpack.c.b16 %v159, %v156
    %v202 = vpack.c.b16 %v160, %v157
    %v203 = vpack.c.b16 %v161, %v158
    %v204 = vpack.c.b16 %v165, %v162
    %v205 = vpack.c.b16 %v166, %v163
    %v206 = vpack.c.b16 %v167, %v164
    %v207 = vpack.c.b16 %v171, %v168
    %v208 = vpack.c.b16 %v172, %v169
    %v209 = vpack.c.b16 %v173, %v170
    %v210 = vpack.c.b16 %v177, %v174
    %v211 = vpack.c.b16 %v178, %v175
    %v212 = vpack.c.b16 %v179, %v176
    %v213 = vpack.c.b16 %v183, %v180
    %v214 = vpack.c.b16 %v184, %v181
    %v215 = vpack.c.b16 %v185, %v182
    %v216 = vpack.c.b16 %v189, %v186
    %v217 = vpack.c.b16 %v190, %v187
    %v218 = vpack.c.b16 %v191, %v188
    %v219 = vpack.c.b16 %v195, %v192
    %v220 = vpack.c.b16 %v196, %v193
    %v221 = vpack.c.b16 %v197, %v194
    %246 = vmatprep.subr.bf16.mxu0 %v220
    %247 = vmatpush1.bf16.msra.mxu0 %v219
    %248 = vmatprep.subr.bf16.mxu0 %v217
    %249 = vmatpush1.bf16.msra.mxu0 %v216
    %250 = vmatprep.subr.bf16.mxu0 %v214
    %251 = vmatpush1.bf16.msra.mxu0 %v213
    %252 = vmatprep.subr.bf16.mxu0 %v211
    %253 = vmatpush1.bf16.msra.mxu0 %v210
    %254 = vmatprep.subr.bf16.mxu0 %v208
    %255 = vmatpush1.bf16.msra.mxu0 %v207
    %256 = vmatprep.subr.bf16.mxu0 %v205
    %257 = vmatpush1.bf16.msra.mxu0 %v204
    %258 = vmatprep.subr.bf16.mxu0 %v202
    %259 = vmatpush1.bf16.msra.mxu0 %v201
    %260 = vmatprep.subr.bf16.mxu0 %v199
    %261 = vmatpush1.bf16.msra.mxu0 %v198
    %262 = vmatprep.subr.bf16.mxu0 0
    %263 = vmatpush2.bf16.msra.mxu0 0
    %264 = vmatprep.subr.bf16.mxu0 0
    %265 = vmatpush2.bf16.msra.mxu0 0
    %266 = vmatprep.subr.bf16.mxu0 0
    %267 = vmatpush2.bf16.msra.mxu0 0
    %268 = vmatprep.subr.bf16.mxu0 0
    %269 = vmatpush2.bf16.msra.mxu0 0
    %270 = vmatprep.subr.bf16.mxu0 0
    %271 = vmatpush2.bf16.msra.mxu0 0
    %272 = vmatprep.subr.bf16.mxu0 0
    %273 = vmatpush2.bf16.msra.mxu0 0
    %274 = vmatprep.subr.bf16.mxu0 0
    %275 = vmatpush2.bf16.msra.mxu0 0
    %276 = vmatprep.subr.bf16.mxu0 0
    %277 = vmatpush2.bf16.msra.mxu0 0
    %278 = vmatprep.mubr.bf16.mxu0 0
    %279 = vmatmul.mubr.bf16.gmra.mxu0 %v67
    %v280 = vpop.f32.mrf.mxu0
    %v281 = vadd.f32 %v106, %v280
    %v282 = vpop.f32.mrf.mxu0
    %v283 = vadd.f32 %v110, %v282
    %v284 = vpop.f32.mrf.mxu0
    %v285 = vadd.f32 %v106, %v284
    %v286 = vpop.f32.mrf.mxu0
    %v287 = vadd.f32 %v110, %v286
    %288 = vmatprep.mubr.bf16.mxu0 0
    %289 = vmatmul.mubr.bf16.gmra.mxu0 %v68
    %v290 = vpop.f32.mrf.mxu0
    %v291 = vadd.f32 %v106, %v290
    %v292 = vpop.f32.mrf.mxu0
    %v293 = vadd.f32 %v110, %v292
    %v294 = vpop.f32.mrf.mxu0
    %v295 = vadd.f32 %v106, %v294
    %v296 = vpop.f32.mrf.mxu0
    %v297 = vadd.f32 %v110, %v296
    %298 = vdwg.mxu0
    %299 = vmatprep.subr.bf16.mxu0 0
    %300 = vmatpush1.bf16.msra.mxu0 %v221
    %301 = vmatprep.subr.bf16.mxu0 0
    %302 = vmatpush1.bf16.msra.mxu0 %v218
    %303 = vmatprep.subr.bf16.mxu0 0
    %304 = vmatpush1.bf16.msra.mxu0 %v215
    %305 = vmatprep.subr.bf16.mxu0 0
    %306 = vmatpush1.bf16.msra.mxu0 %v212
    %307 = vmatprep.subr.bf16.mxu0 0
    %308 = vmatpush1.bf16.msra.mxu0 %v209
    %309 = vmatprep.subr.bf16.mxu0 0
    %310 = vmatpush1.bf16.msra.mxu0 %v206
    %311 = vmatprep.subr.bf16.mxu0 0
    %312 = vmatpush1.bf16.msra.mxu0 %v203
    %313 = vmatprep.subr.bf16.mxu0 0
    %314 = vmatpush1.bf16.msra.mxu0 %v200
    %315 = vmatprep.subr.bf16.mxu0 0
    %316 = vmatpush2.bf16.msra.mxu0 0
    %317 = vmatprep.subr.bf16.mxu0 0
    %318 = vmatpush2.bf16.msra.mxu0 0
    %319 = vmatprep.subr.bf16.mxu0 0
    %320 = vmatpush2.bf16.msra.mxu0 0
    %321 = vmatprep.subr.bf16.mxu0 0
    %322 = vmatpush2.bf16.msra.mxu0 0
    %323 = vmatprep.subr.bf16.mxu0 0
    %324 = vmatpush2.bf16.msra.mxu0 0
    %325 = vmatprep.subr.bf16.mxu0 0
    %326 = vmatpush2.bf16.msra.mxu0 0
    %327 = vmatprep.subr.bf16.mxu0 0
    %328 = vmatpush2.bf16.msra.mxu0 0
    %329 = vmatprep.subr.bf16.mxu0 0
    %330 = vmatpush2.bf16.msra.mxu0 0
    %331 = vmatprep.mubr.bf16.mxu0 0
    %332 = vmatmul.mubr.bf16.gmra.mxu0 %v67
    %v333 = vpop.f32.mrf.mxu0
    %v334 = vadd.f32 %v114, %v333
    %v335 = vpop.f32.mrf.mxu0
    %v336 = vpop.f32.mrf.mxu0
    %v337 = vadd.f32 %v114, %v336
    %v338 = vpop.f32.mrf.mxu0
    %339 = vmatprep.mubr.bf16.mxu0 0
    %340 = vmatmul.mubr.bf16.gmra.mxu0 %v68
    %v341 = vpop.f32.mrf.mxu0
    %v342 = vadd.f32 %v114, %v341
    %v343 = vpop.f32.mrf.mxu0
    %v344 = vpop.f32.mrf.mxu0
    %v345 = vadd.f32 %v114, %v344
    %v346 = vpop.f32.mrf.mxu0
    %347 = vdwg.mxu0
    %v348 = vmul.f32 %v281, 0.17677669
    %v349 = vmul.f32 %v285, 0.17677669
    %v350 = vmul.f32 %v291, 0.17677669
    %v351 = vmul.f32 %v295, 0.17677669
    %v352 = vpack.c.bf16 %v349, %v348
    %v353 = vpack.c.bf16 %v351, %v350
    %356 = vrot.lane.b32.xlu0 %v352, 96
    %v357 = vpop.permute.xlu0 %356
    %358 = vrot.lane.b32.xlu0 %v353, 96
    %v359 = vpop.permute.xlu0 %358
    %360 = vrot.lane.b32.xlu0 %v352, 64
    %v361 = vpop.permute.xlu0 %360
    %362 = vrot.lane.b32.xlu0 %v353, 64
    %v363 = vpop.permute.xlu0 %362
    %364 = vrot.lane.b32.xlu0 %v352, 32
    %v365 = vpop.permute.xlu0 %364
    %366 = vrot.lane.b32.xlu0 %v353, 32
    %v367 = vpop.permute.xlu0 %366
    %v370 = vpack.i.b16 %v357, %v352
    %v372 = vshrl.u32 %v352, 16
    %v373 = vshrl.u32 %v357, 16
    %v374 = vpack.i.b16 %v373, %v372
    %v378 = vpack.i.b16 %v365, %v361
    %v380 = vshrl.u32 %v361, 16
    %v381 = vshrl.u32 %v365, 16
    %v382 = vpack.i.b16 %v381, %v380
    %v385 = vpack.i.b16 0, 0
    %v387 = vshrl.u32 0, 16
    %v388 = vpack.i.b16 %v387, %v387
    %v392 = vpack.i.b16 %v359, %v353
    %v394 = vshrl.u32 %v353, 16
    %v395 = vshrl.u32 %v359, 16
    %v396 = vpack.i.b16 %v395, %v394
    %v400 = vpack.i.b16 %v367, %v363
    %v402 = vshrl.u32 %v363, 16
    %v403 = vshrl.u32 %v367, 16
    %v404 = vpack.i.b16 %v403, %v402
    %v406 = vcombine.high %v370, %v385
    %v408 = vunpack.c.l.s4 1983009808
    %v409 = vunpack.c.0.s8 %v408
    %v410 = vlaneseq
    %v411 = vshrl.u32 %v410, 7
    %v412 = vsub.s32 %v409, %v411
    %v413 = vrot.slane %v370, %v412
    %v415 = vunpack.c.l.s4 1983009808
    %v416 = vunpack.c.0.s8 %v415
    %v417 = vlaneseq
    %v418 = vshrl.u32 %v417, 7
    %v419 = vsub.s32 %v416, %v418
    %v420 = vrot.slane %v406, %v419
    %v421 = vcombine.high %v378, %v385
    %v423 = vunpack.c.l.s4 1983009808
    %v424 = vunpack.c.0.s8 %v423
    %v425 = vlaneseq
    %v426 = vshrl.u32 %v425, 7
    %v427 = vsub.s32 %v424, %v426
    %v428 = vrot.slane %v378, %v427
    %v430 = vunpack.c.l.s4 1983009808
    %v431 = vunpack.c.0.s8 %v430
    %v432 = vlaneseq
    %v433 = vshrl.u32 %v432, 7
    %v434 = vsub.s32 %v431, %v433
    %v435 = vrot.slane %v421, %v434
    %v436 = vcombine.low %v413, %v428
    %v437 = vcombine.high %v413, %v428
    %v439 = vunpack.c.l.s4 1934713408
    %v440 = vunpack.c.0.s8 %v439
    %v441 = vlaneseq
    %v442 = vshrl.u32 %v441, 7
    %v443 = vsub.s32 %v440, %v442
    %v444 = vrot.slane %v436, %v443
    %v446 = vunpack.c.l.s4 1934713408
    %v447 = vunpack.c.0.s8 %v446
    %v448 = vlaneseq
    %v449 = vshrl.u32 %v448, 7
    %v450 = vsub.s32 %v447, %v449
    %v451 = vrot.slane %v437, %v450
    %v452 = vcombine.low %v420, %v435
    %v453 = vcombine.high %v420, %v435
    %v455 = vunpack.c.l.s4 1934713408
    %v456 = vunpack.c.0.s8 %v455
    %v457 = vlaneseq
    %v458 = vshrl.u32 %v457, 7
    %v459 = vsub.s32 %v456, %v458
    %v460 = vrot.slane %v452, %v459
    %v462 = vunpack.c.l.s4 1934713408
    %v463 = vunpack.c.0.s8 %v462
    %v464 = vlaneseq
    %v465 = vshrl.u32 %v464, 7
    %v466 = vsub.s32 %v463, %v465
    %v467 = vrot.slane %v453, %v466
    %v468 = vcombine.high %v444, 0
    %v469 = vcombine.high %v451, 0
    %v470 = vcombine.high %v460, 0
    %v471 = vcombine.high %v467, 0
    %v472 = vcombine.high %v374, %v388
    %v474 = vunpack.c.l.s4 1983009808
    %v475 = vunpack.c.0.s8 %v474
    %v476 = vlaneseq
    %v477 = vshrl.u32 %v476, 7
    %v478 = vsub.s32 %v475, %v477
    %v479 = vrot.slane %v374, %v478
    %v481 = vunpack.c.l.s4 1983009808
    %v482 = vunpack.c.0.s8 %v481
    %v483 = vlaneseq
    %v484 = vshrl.u32 %v483, 7
    %v485 = vsub.s32 %v482, %v484
    %v486 = vrot.slane %v472, %v485
    %v487 = vcombine.high %v382, %v388
    %v489 = vunpack.c.l.s4 1983009808
    %v490 = vunpack.c.0.s8 %v489
    %v491 = vlaneseq
    %v492 = vshrl.u32 %v491, 7
    %v493 = vsub.s32 %v490, %v492
    %v494 = vrot.slane %v382, %v493
    %v496 = vunpack.c.l.s4 1983009808
    %v497 = vunpack.c.0.s8 %v496
    %v498 = vlaneseq
    %v499 = vshrl.u32 %v498, 7
    %v500 = vsub.s32 %v497, %v499
    %v501 = vrot.slane %v487, %v500
    %v502 = vcombine.low %v479, %v494
    %v503 = vcombine.high %v479, %v494
    %v505 = vunpack.c.l.s4 1934713408
    %v506 = vunpack.c.0.s8 %v505
    %v507 = vlaneseq
    %v508 = vshrl.u32 %v507, 7
    %v509 = vsub.s32 %v506, %v508
    %v510 = vrot.slane %v502, %v509
    %v512 = vunpack.c.l.s4 1934713408
    %v513 = vunpack.c.0.s8 %v512
    %v514 = vlaneseq
    %v515 = vshrl.u32 %v514, 7
    %v516 = vsub.s32 %v513, %v515
    %v517 = vrot.slane %v503, %v516
    %v518 = vcombine.low %v486, %v501
    %v519 = vcombine.high %v486, %v501
    %v521 = vunpack.c.l.s4 1934713408
    %v522 = vunpack.c.0.s8 %v521
    %v523 = vlaneseq
    %v524 = vshrl.u32 %v523, 7
    %v525 = vsub.s32 %v522, %v524
    %v526 = vrot.slane %v518, %v525
    %v528 = vunpack.c.l.s4 1934713408
    %v529 = vunpack.c.0.s8 %v528
    %v530 = vlaneseq
    %v531 = vshrl.u32 %v530, 7
    %v532 = vsub.s32 %v529, %v531
    %v533 = vrot.slane %v519, %v532
    %v534 = vcombine.high %v510, 0
    %v535 = vcombine.high %v517, 0
    %v536 = vcombine.high %v526, 0
    %v537 = vcombine.high %v533, 0
    %v538 = vcombine.high %v392, %v385
    %v540 = vunpack.c.l.s4 1983009808
    %v541 = vunpack.c.0.s8 %v540
    %v542 = vlaneseq
    %v543 = vshrl.u32 %v542, 7
    %v544 = vsub.s32 %v541, %v543
    %v545 = vrot.slane %v392, %v544
    %v547 = vunpack.c.l.s4 1983009808
    %v548 = vunpack.c.0.s8 %v547
    %v549 = vlaneseq
    %v550 = vshrl.u32 %v549, 7
    %v551 = vsub.s32 %v548, %v550
    %v552 = vrot.slane %v538, %v551
    %v553 = vcombine.high %v400, %v385
    %v555 = vunpack.c.l.s4 1983009808
    %v556 = vunpack.c.0.s8 %v555
    %v557 = vlaneseq
    %v558 = vshrl.u32 %v557, 7
    %v559 = vsub.s32 %v556, %v558
    %v560 = vrot.slane %v400, %v559
    %v562 = vunpack.c.l.s4 1983009808
    %v563 = vunpack.c.0.s8 %v562
    %v564 = vlaneseq
    %v565 = vshrl.u32 %v564, 7
    %v566 = vsub.s32 %v563, %v565
    %v567 = vrot.slane %v553, %v566
    %v568 = vcombine.low %v545, %v560
    %v569 = vcombine.high %v545, %v560
    %v571 = vunpack.c.l.s4 1934713408
    %v572 = vunpack.c.0.s8 %v571
    %v573 = vlaneseq
    %v574 = vshrl.u32 %v573, 7
    %v575 = vsub.s32 %v572, %v574
    %v576 = vrot.slane %v568, %v575
    %v578 = vunpack.c.l.s4 1934713408
    %v579 = vunpack.c.0.s8 %v578
    %v580 = vlaneseq
    %v581 = vshrl.u32 %v580, 7
    %v582 = vsub.s32 %v579, %v581
    %v583 = vrot.slane %v569, %v582
    %v584 = vcombine.low %v552, %v567
    %v585 = vcombine.high %v552, %v567
    %v587 = vunpack.c.l.s4 1934713408
    %v588 = vunpack.c.0.s8 %v587
    %v589 = vlaneseq
    %v590 = vshrl.u32 %v589, 7
    %v591 = vsub.s32 %v588, %v590
    %v592 = vrot.slane %v584, %v591
    %v594 = vunpack.c.l.s4 1934713408
    %v595 = vunpack.c.0.s8 %v594
    %v596 = vlaneseq
    %v597 = vshrl.u32 %v596, 7
    %v598 = vsub.s32 %v595, %v597
    %v599 = vrot.slane %v585, %v598
    %v600 = vcombine.high %v576, 0
    %v601 = vcombine.high %v583, 0
    %v602 = vcombine.high %v592, 0
    %v603 = vcombine.high %v599, 0
    %v604 = vcombine.high %v396, %v388
    %v606 = vunpack.c.l.s4 1983009808
    %v607 = vunpack.c.0.s8 %v606
    %v608 = vlaneseq
    %v609 = vshrl.u32 %v608, 7
    %v610 = vsub.s32 %v607, %v609
    %v611 = vrot.slane %v396, %v610
    %v613 = vunpack.c.l.s4 1983009808
    %v614 = vunpack.c.0.s8 %v613
    %v615 = vlaneseq
    %v616 = vshrl.u32 %v615, 7
    %v617 = vsub.s32 %v614, %v616
    %v618 = vrot.slane %v604, %v617
    %v619 = vcombine.high %v404, %v388
    %v621 = vunpack.c.l.s4 1983009808
    %v622 = vunpack.c.0.s8 %v621
    %v623 = vlaneseq
    %v624 = vshrl.u32 %v623, 7
    %v625 = vsub.s32 %v622, %v624
    %v626 = vrot.slane %v404, %v625
    %v628 = vunpack.c.l.s4 1983009808
    %v629 = vunpack.c.0.s8 %v628
    %v630 = vlaneseq
    %v631 = vshrl.u32 %v630, 7
    %v632 = vsub.s32 %v629, %v631
    %v633 = vrot.slane %v619, %v632
    %v634 = vcombine.low %v611, %v626
    %v635 = vcombine.high %v611, %v626
    %v637 = vunpack.c.l.s4 1934713408
    %v638 = vunpack.c.0.s8 %v637
    %v639 = vlaneseq
    %v640 = vshrl.u32 %v639, 7
    %v641 = vsub.s32 %v638, %v640
    %v642 = vrot.slane %v634, %v641
    %v644 = vunpack.c.l.s4 1934713408
    %v645 = vunpack.c.0.s8 %v644
    %v646 = vlaneseq
    %v647 = vshrl.u32 %v646, 7
    %v648 = vsub.s32 %v645, %v647
    %v649 = vrot.slane %v635, %v648
    %v650 = vcombine.low %v618, %v633
    %v651 = vcombine.high %v618, %v633
    %v653 = vunpack.c.l.s4 1934713408
    %v654 = vunpack.c.0.s8 %v653
    %v655 = vlaneseq
    %v656 = vshrl.u32 %v655, 7
    %v657 = vsub.s32 %v654, %v656
    %v658 = vrot.slane %v650, %v657
    %v660 = vunpack.c.l.s4 1934713408
    %v661 = vunpack.c.0.s8 %v660
    %v662 = vlaneseq
    %v663 = vshrl.u32 %v662, 7
    %v664 = vsub.s32 %v661, %v663
    %v665 = vrot.slane %v651, %v664
    %v666 = vcombine.high %v642, 0
    %v667 = vcombine.high %v649, 0
    %v668 = vcombine.high %v658, 0
    %v669 = vcombine.high %v665, 0
    %v670 = vcombine.low %v444, %v451
    %v672 = vunpack.c.l.s4 1983009808
    %v673 = vunpack.c.0.s8 %v672
    %v674 = vlaneseq
    %v675 = vshrl.u32 %v674, 7
    %v676 = vsub.s32 %v673, %v675
    %v677 = vrot.slane %v670, %v676
    %v678 = vcombine.low %v468, %v469
    %v680 = vunpack.c.l.s4 1983009808
    %v681 = vunpack.c.0.s8 %v680
    %v682 = vlaneseq
    %v683 = vshrl.u32 %v682, 7
    %v684 = vsub.s32 %v681, %v683
    %v685 = vrot.slane %v678, %v684
    %v686 = vcombine.low %v460, %v467
    %v688 = vunpack.c.l.s4 1983009808
    %v689 = vunpack.c.0.s8 %v688
    %v690 = vlaneseq
    %v691 = vshrl.u32 %v690, 7
    %v692 = vsub.s32 %v689, %v691
    %v693 = vrot.slane %v686, %v692
    %v694 = vcombine.low %v470, %v471
    %v696 = vunpack.c.l.s4 1983009808
    %v697 = vunpack.c.0.s8 %v696
    %v698 = vlaneseq
    %v699 = vshrl.u32 %v698, 7
    %v700 = vsub.s32 %v697, %v699
    %v701 = vrot.slane %v694, %v700
    %v702 = vcombine.low %v677, %v685
    %v704 = vunpack.c.l.s4 1934713408
    %v705 = vunpack.c.0.s8 %v704
    %v706 = vlaneseq
    %v707 = vshrl.u32 %v706, 7
    %v708 = vsub.s32 %v705, %v707
    %v709 = vrot.slane %v702, %v708
    %v710 = vcombine.low %v693, %v701
    %v712 = vunpack.c.l.s4 1934713408
    %v713 = vunpack.c.0.s8 %v712
    %v714 = vlaneseq
    %v715 = vshrl.u32 %v714, 7
    %v716 = vsub.s32 %v713, %v715
    %v717 = vrot.slane %v710, %v716
    %v718 = vcombine.low %v709, %v717
    %v719 = vcombine.high %v709, %v717
    %v720 = vcombine.low %v510, %v517
    %v722 = vunpack.c.l.s4 1983009808
    %v723 = vunpack.c.0.s8 %v722
    %v724 = vlaneseq
    %v725 = vshrl.u32 %v724, 7
    %v726 = vsub.s32 %v723, %v725
    %v727 = vrot.slane %v720, %v726
    %v728 = vcombine.low %v534, %v535
    %v730 = vunpack.c.l.s4 1983009808
    %v731 = vunpack.c.0.s8 %v730
    %v732 = vlaneseq
    %v733 = vshrl.u32 %v732, 7
    %v734 = vsub.s32 %v731, %v733
    %v735 = vrot.slane %v728, %v734
    %v736 = vcombine.low %v526, %v533
    %v738 = vunpack.c.l.s4 1983009808
    %v739 = vunpack.c.0.s8 %v738
    %v740 = vlaneseq
    %v741 = vshrl.u32 %v740, 7
    %v742 = vsub.s32 %v739, %v741
    %v743 = vrot.slane %v736, %v742
    %v744 = vcombine.low %v536, %v537
    %v746 = vunpack.c.l.s4 1983009808
    %v747 = vunpack.c.0.s8 %v746
    %v748 = vlaneseq
    %v749 = vshrl.u32 %v748, 7
    %v750 = vsub.s32 %v747, %v749
    %v751 = vrot.slane %v744, %v750
    %v752 = vcombine.low %v727, %v735
    %v754 = vunpack.c.l.s4 1934713408
    %v755 = vunpack.c.0.s8 %v754
    %v756 = vlaneseq
    %v757 = vshrl.u32 %v756, 7
    %v758 = vsub.s32 %v755, %v757
    %v759 = vrot.slane %v752, %v758
    %v760 = vcombine.low %v743, %v751
    %v762 = vunpack.c.l.s4 1934713408
    %v763 = vunpack.c.0.s8 %v762
    %v764 = vlaneseq
    %v765 = vshrl.u32 %v764, 7
    %v766 = vsub.s32 %v763, %v765
    %v767 = vrot.slane %v760, %v766
    %v768 = vcombine.low %v759, %v767
    %v769 = vcombine.high %v759, %v767
    %v770 = vcombine.low %v576, %v583
    %v772 = vunpack.c.l.s4 1983009808
    %v773 = vunpack.c.0.s8 %v772
    %v774 = vlaneseq
    %v775 = vshrl.u32 %v774, 7
    %v776 = vsub.s32 %v773, %v775
    %v777 = vrot.slane %v770, %v776
    %v778 = vcombine.low %v600, %v601
    %v780 = vunpack.c.l.s4 1983009808
    %v781 = vunpack.c.0.s8 %v780
    %v782 = vlaneseq
    %v783 = vshrl.u32 %v782, 7
    %v784 = vsub.s32 %v781, %v783
    %v785 = vrot.slane %v778, %v784
    %v786 = vcombine.low %v592, %v599
    %v788 = vunpack.c.l.s4 1983009808
    %v789 = vunpack.c.0.s8 %v788
    %v790 = vlaneseq
    %v791 = vshrl.u32 %v790, 7
    %v792 = vsub.s32 %v789, %v791
    %v793 = vrot.slane %v786, %v792
    %v794 = vcombine.low %v602, %v603
    %v796 = vunpack.c.l.s4 1983009808
    %v797 = vunpack.c.0.s8 %v796
    %v798 = vlaneseq
    %v799 = vshrl.u32 %v798, 7
    %v800 = vsub.s32 %v797, %v799
    %v801 = vrot.slane %v794, %v800
    %v802 = vcombine.low %v777, %v785
    %v804 = vunpack.c.l.s4 1934713408
    %v805 = vunpack.c.0.s8 %v804
    %v806 = vlaneseq
    %v807 = vshrl.u32 %v806, 7
    %v808 = vsub.s32 %v805, %v807
    %v809 = vrot.slane %v802, %v808
    %v810 = vcombine.low %v793, %v801
    %v812 = vunpack.c.l.s4 1934713408
    %v813 = vunpack.c.0.s8 %v812
    %v814 = vlaneseq
    %v815 = vshrl.u32 %v814, 7
    %v816 = vsub.s32 %v813, %v815
    %v817 = vrot.slane %v810, %v816
    %v818 = vcombine.low %v809, %v817
    %v819 = vcombine.high %v809, %v817
    %v820 = vcombine.low %v642, %v649
    %v822 = vunpack.c.l.s4 1983009808
    %v823 = vunpack.c.0.s8 %v822
    %v824 = vlaneseq
    %v825 = vshrl.u32 %v824, 7
    %v826 = vsub.s32 %v823, %v825
    %v827 = vrot.slane %v820, %v826
    %v828 = vcombine.low %v666, %v667
    %v830 = vunpack.c.l.s4 1983009808
    %v831 = vunpack.c.0.s8 %v830
    %v832 = vlaneseq
    %v833 = vshrl.u32 %v832, 7
    %v834 = vsub.s32 %v831, %v833
    %v835 = vrot.slane %v828, %v834
    %v836 = vcombine.low %v658, %v665
    %v838 = vunpack.c.l.s4 1983009808
    %v839 = vunpack.c.0.s8 %v838
    %v840 = vlaneseq
    %v841 = vshrl.u32 %v840, 7
    %v842 = vsub.s32 %v839, %v841
    %v843 = vrot.slane %v836, %v842
    %v844 = vcombine.low %v668, %v669
    %v846 = vunpack.c.l.s4 1983009808
    %v847 = vunpack.c.0.s8 %v846
    %v848 = vlaneseq
    %v849 = vshrl.u32 %v848, 7
    %v850 = vsub.s32 %v847, %v849
    %v851 = vrot.slane %v844, %v850
    %v852 = vcombine.low %v827, %v835
    %v854 = vunpack.c.l.s4 1934713408
    %v855 = vunpack.c.0.s8 %v854
    %v856 = vlaneseq
    %v857 = vshrl.u32 %v856, 7
    %v858 = vsub.s32 %v855, %v857
    %v859 = vrot.slane %v852, %v858
    %v860 = vcombine.low %v843, %v851
    %v862 = vunpack.c.l.s4 1934713408
    %v863 = vunpack.c.0.s8 %v862
    %v864 = vlaneseq
    %v865 = vshrl.u32 %v864, 7
    %v866 = vsub.s32 %v863, %v865
    %v867 = vrot.slane %v860, %v866
    %v868 = vcombine.low %v859, %v867
    %v869 = vcombine.high %v859, %v867
    %v872 = vpack.i.b16 %v768, %v718
    %v873 = vshrl.u32 %v718, 16
    %v874 = vshrl.u32 %v768, 16
    %v875 = vpack.i.b16 %v874, %v873
    %v878 = vpack.i.b16 %v769, %v719
    %v879 = vshrl.u32 %v719, 16
    %v880 = vshrl.u32 %v769, 16
    %v881 = vpack.i.b16 %v880, %v879
    %v884 = vpack.i.b16 %v868, %v818
    %v885 = vshrl.u32 %v818, 16
    %v886 = vshrl.u32 %v868, 16
    %v887 = vpack.i.b16 %v886, %v885
    %v890 = vpack.i.b16 %v869, %v819
    %v891 = vshrl.u32 %v819, 16
    %v892 = vshrl.u32 %v869, 16
    %v893 = vpack.i.b16 %v892, %v891
    %v894 = vpack.c.bf16 %v287, %v283
    %v895 = vpack.c.bf16 %v297, %v293
    %898 = vrot.lane.b32.xlu0 %v894, 96
    %v899 = vpop.permute.xlu0 %898
    %900 = vrot.lane.b32.xlu0 %v895, 96
    %v901 = vpop.permute.xlu0 %900
    %902 = vrot.lane.b32.xlu0 %v894, 64
    %v903 = vpop.permute.xlu0 %902
    %904 = vrot.lane.b32.xlu0 %v895, 64
    %v905 = vpop.permute.xlu0 %904
    %906 = vrot.lane.b32.xlu0 %v894, 32
    %v907 = vpop.permute.xlu0 %906
    %908 = vrot.lane.b32.xlu0 %v895, 32
    %v909 = vpop.permute.xlu0 %908
    %v912 = vpack.i.b16 %v899, %v894
    %v914 = vshrl.u32 %v894, 16
    %v915 = vshrl.u32 %v899, 16
    %v916 = vpack.i.b16 %v915, %v914
    %v920 = vpack.i.b16 %v907, %v903
    %v922 = vshrl.u32 %v903, 16
    %v923 = vshrl.u32 %v907, 16
    %v924 = vpack.i.b16 %v923, %v922
    %v928 = vpack.i.b16 %v901, %v895
    %v930 = vshrl.u32 %v895, 16
    %v931 = vshrl.u32 %v901, 16
    %v932 = vpack.i.b16 %v931, %v930
    %v936 = vpack.i.b16 %v909, %v905
    %v938 = vshrl.u32 %v905, 16
    %v939 = vshrl.u32 %v909, 16
    %v940 = vpack.i.b16 %v939, %v938
    %v942 = vcombine.high %v912, %v385
    %v944 = vunpack.c.l.s4 1983009808
    %v945 = vunpack.c.0.s8 %v944
    %v946 = vlaneseq
    %v947 = vshrl.u32 %v946, 7
    %v948 = vsub.s32 %v945, %v947
    %v949 = vrot.slane %v912, %v948
    %v951 = vunpack.c.l.s4 1983009808
    %v952 = vunpack.c.0.s8 %v951
    %v953 = vlaneseq
    %v954 = vshrl.u32 %v953, 7
    %v955 = vsub.s32 %v952, %v954
    %v956 = vrot.slane %v942, %v955
    %v957 = vcombine.high %v920, %v385
    %v959 = vunpack.c.l.s4 1983009808
    %v960 = vunpack.c.0.s8 %v959
    %v961 = vlaneseq
    %v962 = vshrl.u32 %v961, 7
    %v963 = vsub.s32 %v960, %v962
    %v964 = vrot.slane %v920, %v963
    %v966 = vunpack.c.l.s4 1983009808
    %v967 = vunpack.c.0.s8 %v966
    %v968 = vlaneseq
    %v969 = vshrl.u32 %v968, 7
    %v970 = vsub.s32 %v967, %v969
    %v971 = vrot.slane %v957, %v970
    %v972 = vcombine.low %v949, %v964
    %v973 = vcombine.high %v949, %v964
    %v975 = vunpack.c.l.s4 1934713408
    %v976 = vunpack.c.0.s8 %v975
    %v977 = vlaneseq
    %v978 = vshrl.u32 %v977, 7
    %v979 = vsub.s32 %v976, %v978
    %v980 = vrot.slane %v972, %v979
    %v982 = vunpack.c.l.s4 1934713408
    %v983 = vunpack.c.0.s8 %v982
    %v984 = vlaneseq
    %v985 = vshrl.u32 %v984, 7
    %v986 = vsub.s32 %v983, %v985
    %v987 = vrot.slane %v973, %v986
    %v988 = vcombine.low %v956, %v971
    %v989 = vcombine.high %v956, %v971
    %v991 = vunpack.c.l.s4 1934713408
    %v992 = vunpack.c.0.s8 %v991
    %v993 = vlaneseq
    %v994 = vshrl.u32 %v993, 7
    %v995 = vsub.s32 %v992, %v994
    %v996 = vrot.slane %v988, %v995
    %v998 = vunpack.c.l.s4 1934713408
    %v999 = vunpack.c.0.s8 %v998
    %v1000 = vlaneseq
    %v1001 = vshrl.u32 %v1000, 7
    %v1002 = vsub.s32 %v999, %v1001
    %v1003 = vrot.slane %v989, %v1002
    %v1004 = vcombine.high %v980, 0
    %v1005 = vcombine.high %v987, 0
    %v1006 = vcombine.high %v996, 0
    %v1007 = vcombine.high %v1003, 0
    %v1008 = vcombine.high %v916, %v388
    %v1010 = vunpack.c.l.s4 1983009808
    %v1011 = vunpack.c.0.s8 %v1010
    %v1012 = vlaneseq
    %v1013 = vshrl.u32 %v1012, 7
    %v1014 = vsub.s32 %v1011, %v1013
    %v1015 = vrot.slane %v916, %v1014
    %v1017 = vunpack.c.l.s4 1983009808
    %v1018 = vunpack.c.0.s8 %v1017
    %v1019 = vlaneseq
    %v1020 = vshrl.u32 %v1019, 7
    %v1021 = vsub.s32 %v1018, %v1020
    %v1022 = vrot.slane %v1008, %v1021
    %v1023 = vcombine.high %v924, %v388
    %v1025 = vunpack.c.l.s4 1983009808
    %v1026 = vunpack.c.0.s8 %v1025
    %v1027 = vlaneseq
    %v1028 = vshrl.u32 %v1027, 7
    %v1029 = vsub.s32 %v1026, %v1028
    %v1030 = vrot.slane %v924, %v1029
    %v1032 = vunpack.c.l.s4 1983009808
    %v1033 = vunpack.c.0.s8 %v1032
    %v1034 = vlaneseq
    %v1035 = vshrl.u32 %v1034, 7
    %v1036 = vsub.s32 %v1033, %v1035
    %v1037 = vrot.slane %v1023, %v1036
    %v1038 = vcombine.low %v1015, %v1030
    %v1039 = vcombine.high %v1015, %v1030
    %v1041 = vunpack.c.l.s4 1934713408
    %v1042 = vunpack.c.0.s8 %v1041
    %v1043 = vlaneseq
    %v1044 = vshrl.u32 %v1043, 7
    %v1045 = vsub.s32 %v1042, %v1044
    %v1046 = vrot.slane %v1038, %v1045
    %v1048 = vunpack.c.l.s4 1934713408
    %v1049 = vunpack.c.0.s8 %v1048
    %v1050 = vlaneseq
    %v1051 = vshrl.u32 %v1050, 7
    %v1052 = vsub.s32 %v1049, %v1051
    %v1053 = vrot.slane %v1039, %v1052
    %v1054 = vcombine.low %v1022, %v1037
    %v1055 = vcombine.high %v1022, %v1037
    %v1057 = vunpack.c.l.s4 1934713408
    %v1058 = vunpack.c.0.s8 %v1057
    %v1059 = vlaneseq
    %v1060 = vshrl.u32 %v1059, 7
    %v1061 = vsub.s32 %v1058, %v1060
    %v1062 = vrot.slane %v1054, %v1061
    %v1064 = vunpack.c.l.s4 1934713408
    %v1065 = vunpack.c.0.s8 %v1064
    %v1066 = vlaneseq
    %v1067 = vshrl.u32 %v1066, 7
    %v1068 = vsub.s32 %v1065, %v1067
    %v1069 = vrot.slane %v1055, %v1068
    %v1070 = vcombine.high %v1046, 0
    %v1071 = vcombine.high %v1053, 0
    %v1072 = vcombine.high %v1062, 0
    %v1073 = vcombine.high %v1069, 0
    %v1074 = vcombine.high %v928, %v385
    %v1076 = vunpack.c.l.s4 1983009808
    %v1077 = vunpack.c.0.s8 %v1076
    %v1078 = vlaneseq
    %v1079 = vshrl.u32 %v1078, 7
    %v1080 = vsub.s32 %v1077, %v1079
    %v1081 = vrot.slane %v928, %v1080
    %v1083 = vunpack.c.l.s4 1983009808
    %v1084 = vunpack.c.0.s8 %v1083
    %v1085 = vlaneseq
    %v1086 = vshrl.u32 %v1085, 7
    %v1087 = vsub.s32 %v1084, %v1086
    %v1088 = vrot.slane %v1074, %v1087
    %v1089 = vcombine.high %v936, %v385
    %v1091 = vunpack.c.l.s4 1983009808
    %v1092 = vunpack.c.0.s8 %v1091
    %v1093 = vlaneseq
    %v1094 = vshrl.u32 %v1093, 7
    %v1095 = vsub.s32 %v1092, %v1094
    %v1096 = vrot.slane %v936, %v1095
    %v1098 = vunpack.c.l.s4 1983009808
    %v1099 = vunpack.c.0.s8 %v1098
    %v1100 = vlaneseq
    %v1101 = vshrl.u32 %v1100, 7
    %v1102 = vsub.s32 %v1099, %v1101
    %v1103 = vrot.slane %v1089, %v1102
    %v1104 = vcombine.low %v1081, %v1096
    %v1105 = vcombine.high %v1081, %v1096
    %v1107 = vunpack.c.l.s4 1934713408
    %v1108 = vunpack.c.0.s8 %v1107
    %v1109 = vlaneseq
    %v1110 = vshrl.u32 %v1109, 7
    %v1111 = vsub.s32 %v1108, %v1110
    %v1112 = vrot.slane %v1104, %v1111
    %v1114 = vunpack.c.l.s4 1934713408
    %v1115 = vunpack.c.0.s8 %v1114
    %v1116 = vlaneseq
    %v1117 = vshrl.u32 %v1116, 7
    %v1118 = vsub.s32 %v1115, %v1117
    %v1119 = vrot.slane %v1105, %v1118
    %v1120 = vcombine.low %v1088, %v1103
    %v1121 = vcombine.high %v1088, %v1103
    %v1123 = vunpack.c.l.s4 1934713408
    %v1124 = vunpack.c.0.s8 %v1123
    %v1125 = vlaneseq
    %v1126 = vshrl.u32 %v1125, 7
    %v1127 = vsub.s32 %v1124, %v1126
    %v1128 = vrot.slane %v1120, %v1127
    %v1130 = vunpack.c.l.s4 1934713408
    %v1131 = vunpack.c.0.s8 %v1130
    %v1132 = vlaneseq
    %v1133 = vshrl.u32 %v1132, 7
    %v1134 = vsub.s32 %v1131, %v1133
    %v1135 = vrot.slane %v1121, %v1134
    %v1136 = vcombine.high %v1112, 0
    %v1137 = vcombine.high %v1119, 0
    %v1138 = vcombine.high %v1128, 0
    %v1139 = vcombine.high %v1135, 0
    %v1140 = vcombine.high %v932, %v388
    %v1142 = vunpack.c.l.s4 1983009808
    %v1143 = vunpack.c.0.s8 %v1142
    %v1144 = vlaneseq
    %v1145 = vshrl.u32 %v1144, 7
    %v1146 = vsub.s32 %v1143, %v1145
    %v1147 = vrot.slane %v932, %v1146
    %v1149 = vunpack.c.l.s4 1983009808
    %v1150 = vunpack.c.0.s8 %v1149
    %v1151 = vlaneseq
    %v1152 = vshrl.u32 %v1151, 7
    %v1153 = vsub.s32 %v1150, %v1152
    %v1154 = vrot.slane %v1140, %v1153
    %v1155 = vcombine.high %v940, %v388
    %v1157 = vunpack.c.l.s4 1983009808
    %v1158 = vunpack.c.0.s8 %v1157
    %v1159 = vlaneseq
    %v1160 = vshrl.u32 %v1159, 7
    %v1161 = vsub.s32 %v1158, %v1160
    %v1162 = vrot.slane %v940, %v1161
    %v1164 = vunpack.c.l.s4 1983009808
    %v1165 = vunpack.c.0.s8 %v1164
    %v1166 = vlaneseq
    %v1167 = vshrl.u32 %v1166, 7
    %v1168 = vsub.s32 %v1165, %v1167
    %v1169 = vrot.slane %v1155, %v1168
    %v1170 = vcombine.low %v1147, %v1162
    %v1171 = vcombine.high %v1147, %v1162
    %v1173 = vunpack.c.l.s4 1934713408
    %v1174 = vunpack.c.0.s8 %v1173
    %v1175 = vlaneseq
    %v1176 = vshrl.u32 %v1175, 7
    %v1177 = vsub.s32 %v1174, %v1176
    %v1178 = vrot.slane %v1170, %v1177
    %v1180 = vunpack.c.l.s4 1934713408
    %v1181 = vunpack.c.0.s8 %v1180
    %v1182 = vlaneseq
    %v1183 = vshrl.u32 %v1182, 7
    %v1184 = vsub.s32 %v1181, %v1183
    %v1185 = vrot.slane %v1171, %v1184
    %v1186 = vcombine.low %v1154, %v1169
    %v1187 = vcombine.high %v1154, %v1169
    %v1189 = vunpack.c.l.s4 1934713408
    %v1190 = vunpack.c.0.s8 %v1189
    %v1191 = vlaneseq
    %v1192 = vshrl.u32 %v1191, 7
    %v1193 = vsub.s32 %v1190, %v1192
    %v1194 = vrot.slane %v1186, %v1193
    %v1196 = vunpack.c.l.s4 1934713408
    %v1197 = vunpack.c.0.s8 %v1196
    %v1198 = vlaneseq
    %v1199 = vshrl.u32 %v1198, 7
    %v1200 = vsub.s32 %v1197, %v1199
    %v1201 = vrot.slane %v1187, %v1200
    %v1202 = vcombine.high %v1178, 0
    %v1203 = vcombine.high %v1185, 0
    %v1204 = vcombine.high %v1194, 0
    %v1205 = vcombine.high %v1201, 0
    %v1206 = vcombine.low %v980, %v987
    %v1208 = vunpack.c.l.s4 1983009808
    %v1209 = vunpack.c.0.s8 %v1208
    %v1210 = vlaneseq
    %v1211 = vshrl.u32 %v1210, 7
    %v1212 = vsub.s32 %v1209, %v1211
    %v1213 = vrot.slane %v1206, %v1212
    %v1214 = vcombine.low %v1004, %v1005
    %v1216 = vunpack.c.l.s4 1983009808
    %v1217 = vunpack.c.0.s8 %v1216
    %v1218 = vlaneseq
    %v1219 = vshrl.u32 %v1218, 7
    %v1220 = vsub.s32 %v1217, %v1219
    %v1221 = vrot.slane %v1214, %v1220
    %v1222 = vcombine.low %v996, %v1003
    %v1224 = vunpack.c.l.s4 1983009808
    %v1225 = vunpack.c.0.s8 %v1224
    %v1226 = vlaneseq
    %v1227 = vshrl.u32 %v1226, 7
    %v1228 = vsub.s32 %v1225, %v1227
    %v1229 = vrot.slane %v1222, %v1228
    %v1230 = vcombine.low %v1006, %v1007
    %v1232 = vunpack.c.l.s4 1983009808
    %v1233 = vunpack.c.0.s8 %v1232
    %v1234 = vlaneseq
    %v1235 = vshrl.u32 %v1234, 7
    %v1236 = vsub.s32 %v1233, %v1235
    %v1237 = vrot.slane %v1230, %v1236
    %v1238 = vcombine.low %v1213, %v1221
    %v1240 = vunpack.c.l.s4 1934713408
    %v1241 = vunpack.c.0.s8 %v1240
    %v1242 = vlaneseq
    %v1243 = vshrl.u32 %v1242, 7
    %v1244 = vsub.s32 %v1241, %v1243
    %v1245 = vrot.slane %v1238, %v1244
    %v1246 = vcombine.low %v1229, %v1237
    %v1248 = vunpack.c.l.s4 1934713408
    %v1249 = vunpack.c.0.s8 %v1248
    %v1250 = vlaneseq
    %v1251 = vshrl.u32 %v1250, 7
    %v1252 = vsub.s32 %v1249, %v1251
    %v1253 = vrot.slane %v1246, %v1252
    %v1254 = vcombine.low %v1245, %v1253
    %v1255 = vcombine.high %v1245, %v1253
    %v1256 = vcombine.low %v1046, %v1053
    %v1258 = vunpack.c.l.s4 1983009808
    %v1259 = vunpack.c.0.s8 %v1258
    %v1260 = vlaneseq
    %v1261 = vshrl.u32 %v1260, 7
    %v1262 = vsub.s32 %v1259, %v1261
    %v1263 = vrot.slane %v1256, %v1262
    %v1264 = vcombine.low %v1070, %v1071
    %v1266 = vunpack.c.l.s4 1983009808
    %v1267 = vunpack.c.0.s8 %v1266
    %v1268 = vlaneseq
    %v1269 = vshrl.u32 %v1268, 7
    %v1270 = vsub.s32 %v1267, %v1269
    %v1271 = vrot.slane %v1264, %v1270
    %v1272 = vcombine.low %v1062, %v1069
    %v1274 = vunpack.c.l.s4 1983009808
    %v1275 = vunpack.c.0.s8 %v1274
    %v1276 = vlaneseq
    %v1277 = vshrl.u32 %v1276, 7
    %v1278 = vsub.s32 %v1275, %v1277
    %v1279 = vrot.slane %v1272, %v1278
    %v1280 = vcombine.low %v1072, %v1073
    %v1282 = vunpack.c.l.s4 1983009808
    %v1283 = vunpack.c.0.s8 %v1282
    %v1284 = vlaneseq
    %v1285 = vshrl.u32 %v1284, 7
    %v1286 = vsub.s32 %v1283, %v1285
    %v1287 = vrot.slane %v1280, %v1286
    %v1288 = vcombine.low %v1263, %v1271
    %v1290 = vunpack.c.l.s4 1934713408
    %v1291 = vunpack.c.0.s8 %v1290
    %v1292 = vlaneseq
    %v1293 = vshrl.u32 %v1292, 7
    %v1294 = vsub.s32 %v1291, %v1293
    %v1295 = vrot.slane %v1288, %v1294
    %v1296 = vcombine.low %v1279, %v1287
    %v1298 = vunpack.c.l.s4 1934713408
    %v1299 = vunpack.c.0.s8 %v1298
    %v1300 = vlaneseq
    %v1301 = vshrl.u32 %v1300, 7
    %v1302 = vsub.s32 %v1299, %v1301
    %v1303 = vrot.slane %v1296, %v1302
    %v1304 = vcombine.low %v1295, %v1303
    %v1305 = vcombine.high %v1295, %v1303
    %v1306 = vcombine.low %v1112, %v1119
    %v1308 = vunpack.c.l.s4 1983009808
    %v1309 = vunpack.c.0.s8 %v1308
    %v1310 = vlaneseq
    %v1311 = vshrl.u32 %v1310, 7
    %v1312 = vsub.s32 %v1309, %v1311
    %v1313 = vrot.slane %v1306, %v1312
    %v1314 = vcombine.low %v1136, %v1137
    %v1316 = vunpack.c.l.s4 1983009808
    %v1317 = vunpack.c.0.s8 %v1316
    %v1318 = vlaneseq
    %v1319 = vshrl.u32 %v1318, 7
    %v1320 = vsub.s32 %v1317, %v1319
    %v1321 = vrot.slane %v1314, %v1320
    %v1322 = vcombine.low %v1128, %v1135
    %v1324 = vunpack.c.l.s4 1983009808
    %v1325 = vunpack.c.0.s8 %v1324
    %v1326 = vlaneseq
    %v1327 = vshrl.u32 %v1326, 7
    %v1328 = vsub.s32 %v1325, %v1327
    %v1329 = vrot.slane %v1322, %v1328
    %v1330 = vcombine.low %v1138, %v1139
    %v1332 = vunpack.c.l.s4 1983009808
    %v1333 = vunpack.c.0.s8 %v1332
    %v1334 = vlaneseq
    %v1335 = vshrl.u32 %v1334, 7
    %v1336 = vsub.s32 %v1333, %v1335
    %v1337 = vrot.slane %v1330, %v1336
    %v1338 = vcombine.low %v1313, %v1321
    %v1340 = vunpack.c.l.s4 1934713408
    %v1341 = vunpack.c.0.s8 %v1340
    %v1342 = vlaneseq
    %v1343 = vshrl.u32 %v1342, 7
    %v1344 = vsub.s32 %v1341, %v1343
    %v1345 = vrot.slane %v1338, %v1344
    %v1346 = vcombine.low %v1329, %v1337
    %v1348 = vunpack.c.l.s4 1934713408
    %v1349 = vunpack.c.0.s8 %v1348
    %v1350 = vlaneseq
    %v1351 = vshrl.u32 %v1350, 7
    %v1352 = vsub.s32 %v1349, %v1351
    %v1353 = vrot.slane %v1346, %v1352
    %v1354 = vcombine.low %v1345, %v1353
    %v1355 = vcombine.high %v1345, %v1353
    %v1356 = vcombine.low %v1178, %v1185
    %v1358 = vunpack.c.l.s4 1983009808
    %v1359 = vunpack.c.0.s8 %v1358
    %v1360 = vlaneseq
    %v1361 = vshrl.u32 %v1360, 7
    %v1362 = vsub.s32 %v1359, %v1361
    %v1363 = vrot.slane %v1356, %v1362
    %v1364 = vcombine.low %v1202, %v1203
    %v1366 = vunpack.c.l.s4 1983009808
    %v1367 = vunpack.c.0.s8 %v1366
    %v1368 = vlaneseq
    %v1369 = vshrl.u32 %v1368, 7
    %v1370 = vsub.s32 %v1367, %v1369
    %v1371 = vrot.slane %v1364, %v1370
    %v1372 = vcombine.low %v1194, %v1201
    %v1374 = vunpack.c.l.s4 1983009808
    %v1375 = vunpack.c.0.s8 %v1374
    %v1376 = vlaneseq
    %v1377 = vshrl.u32 %v1376, 7
    %v1378 = vsub.s32 %v1375, %v1377
    %v1379 = vrot.slane %v1372, %v1378
    %v1380 = vcombine.low %v1204, %v1205
    %v1382 = vunpack.c.l.s4 1983009808
    %v1383 = vunpack.c.0.s8 %v1382
    %v1384 = vlaneseq
    %v1385 = vshrl.u32 %v1384, 7
    %v1386 = vsub.s32 %v1383, %v1385
    %v1387 = vrot.slane %v1380, %v1386
    %v1388 = vcombine.low %v1363, %v1371
    %v1390 = vunpack.c.l.s4 1934713408
    %v1391 = vunpack.c.0.s8 %v1390
    %v1392 = vlaneseq
    %v1393 = vshrl.u32 %v1392, 7
    %v1394 = vsub.s32 %v1391, %v1393
    %v1395 = vrot.slane %v1388, %v1394
    %v1396 = vcombine.low %v1379, %v1387
    %v1398 = vunpack.c.l.s4 1934713408
    %v1399 = vunpack.c.0.s8 %v1398
    %v1400 = vlaneseq
    %v1401 = vshrl.u32 %v1400, 7
    %v1402 = vsub.s32 %v1399, %v1401
    %v1403 = vrot.slane %v1396, %v1402
    %v1404 = vcombine.low %v1395, %v1403
    %v1405 = vcombine.high %v1395, %v1403
    %v1408 = vpack.i.b16 %v1304, %v1254
    %v1409 = vshrl.u32 %v1254, 16
    %v1410 = vshrl.u32 %v1304, 16
    %v1411 = vpack.i.b16 %v1410, %v1409
    %v1414 = vpack.i.b16 %v1305, %v1255
    %v1415 = vshrl.u32 %v1255, 16
    %v1416 = vshrl.u32 %v1305, 16
    %v1417 = vpack.i.b16 %v1416, %v1415
    %v1420 = vpack.i.b16 %v1404, %v1354
    %v1421 = vshrl.u32 %v1354, 16
    %v1422 = vshrl.u32 %v1404, 16
    %v1423 = vpack.i.b16 %v1422, %v1421
    %v1426 = vpack.i.b16 %v1405, %v1355
    %v1427 = vshrl.u32 %v1355, 16
    %v1428 = vshrl.u32 %v1405, 16
    %v1429 = vpack.i.b16 %v1428, %v1427
    %v1430 = vpack.c.bf16 %v337, %v334
    %v1431 = vpack.c.bf16 %v345, %v342
    %1434 = vrot.lane.b32.xlu0 %v1430, 96
    %v1435 = vpop.permute.xlu0 %1434
    %1436 = vrot.lane.b32.xlu0 %v1431, 96
    %v1437 = vpop.permute.xlu0 %1436
    %1438 = vrot.lane.b32.xlu0 %v1430, 64
    %v1439 = vpop.permute.xlu0 %1438
    %1440 = vrot.lane.b32.xlu0 %v1431, 64
    %v1441 = vpop.permute.xlu0 %1440
    %1442 = vrot.lane.b32.xlu0 %v1430, 32
    %v1443 = vpop.permute.xlu0 %1442
    %1444 = vrot.lane.b32.xlu0 %v1431, 32
    %v1445 = vpop.permute.xlu0 %1444
    %v1448 = vpack.i.b16 %v1435, %v1430
    %v1450 = vshrl.u32 %v1430, 16
    %v1451 = vshrl.u32 %v1435, 16
    %v1452 = vpack.i.b16 %v1451, %v1450
    %v1456 = vpack.i.b16 %v1443, %v1439
    %v1458 = vshrl.u32 %v1439, 16
    %v1459 = vshrl.u32 %v1443, 16
    %v1460 = vpack.i.b16 %v1459, %v1458
    %v1464 = vpack.i.b16 %v1437, %v1431
    %v1466 = vshrl.u32 %v1431, 16
    %v1467 = vshrl.u32 %v1437, 16
    %v1468 = vpack.i.b16 %v1467, %v1466
    %v1472 = vpack.i.b16 %v1445, %v1441
    %v1474 = vshrl.u32 %v1441, 16
    %v1475 = vshrl.u32 %v1445, 16
    %v1476 = vpack.i.b16 %v1475, %v1474
    %v1478 = vcombine.high %v1448, %v385
    %v1480 = vunpack.c.l.s4 1983009808
    %v1481 = vunpack.c.0.s8 %v1480
    %v1482 = vlaneseq
    %v1483 = vshrl.u32 %v1482, 7
    %v1484 = vsub.s32 %v1481, %v1483
    %v1485 = vrot.slane %v1448, %v1484
    %v1487 = vunpack.c.l.s4 1983009808
    %v1488 = vunpack.c.0.s8 %v1487
    %v1489 = vlaneseq
    %v1490 = vshrl.u32 %v1489, 7
    %v1491 = vsub.s32 %v1488, %v1490
    %v1492 = vrot.slane %v1478, %v1491
    %v1493 = vcombine.high %v1456, %v385
    %v1495 = vunpack.c.l.s4 1983009808
    %v1496 = vunpack.c.0.s8 %v1495
    %v1497 = vlaneseq
    %v1498 = vshrl.u32 %v1497, 7
    %v1499 = vsub.s32 %v1496, %v1498
    %v1500 = vrot.slane %v1456, %v1499
    %v1502 = vunpack.c.l.s4 1983009808
    %v1503 = vunpack.c.0.s8 %v1502
    %v1504 = vlaneseq
    %v1505 = vshrl.u32 %v1504, 7
    %v1506 = vsub.s32 %v1503, %v1505
    %v1507 = vrot.slane %v1493, %v1506
    %v1508 = vcombine.low %v1485, %v1500
    %v1509 = vcombine.high %v1485, %v1500
    %v1511 = vunpack.c.l.s4 1934713408
    %v1512 = vunpack.c.0.s8 %v1511
    %v1513 = vlaneseq
    %v1514 = vshrl.u32 %v1513, 7
    %v1515 = vsub.s32 %v1512, %v1514
    %v1516 = vrot.slane %v1508, %v1515
    %v1518 = vunpack.c.l.s4 1934713408
    %v1519 = vunpack.c.0.s8 %v1518
    %v1520 = vlaneseq
    %v1521 = vshrl.u32 %v1520, 7
    %v1522 = vsub.s32 %v1519, %v1521
    %v1523 = vrot.slane %v1509, %v1522
    %v1524 = vcombine.low %v1492, %v1507
    %v1525 = vcombine.high %v1492, %v1507
    %v1527 = vunpack.c.l.s4 1934713408
    %v1528 = vunpack.c.0.s8 %v1527
    %v1529 = vlaneseq
    %v1530 = vshrl.u32 %v1529, 7
    %v1531 = vsub.s32 %v1528, %v1530
    %v1532 = vrot.slane %v1524, %v1531
    %v1534 = vunpack.c.l.s4 1934713408
    %v1535 = vunpack.c.0.s8 %v1534
    %v1536 = vlaneseq
    %v1537 = vshrl.u32 %v1536, 7
    %v1538 = vsub.s32 %v1535, %v1537
    %v1539 = vrot.slane %v1525, %v1538
    %v1540 = vcombine.high %v1516, 0
    %v1541 = vcombine.high %v1523, 0
    %v1542 = vcombine.high %v1532, 0
    %v1543 = vcombine.high %v1539, 0
    %v1544 = vcombine.high %v1452, %v388
    %v1546 = vunpack.c.l.s4 1983009808
    %v1547 = vunpack.c.0.s8 %v1546
    %v1548 = vlaneseq
    %v1549 = vshrl.u32 %v1548, 7
    %v1550 = vsub.s32 %v1547, %v1549
    %v1551 = vrot.slane %v1452, %v1550
    %v1553 = vunpack.c.l.s4 1983009808
    %v1554 = vunpack.c.0.s8 %v1553
    %v1555 = vlaneseq
    %v1556 = vshrl.u32 %v1555, 7
    %v1557 = vsub.s32 %v1554, %v1556
    %v1558 = vrot.slane %v1544, %v1557
    %v1559 = vcombine.high %v1460, %v388
    %v1561 = vunpack.c.l.s4 1983009808
    %v1562 = vunpack.c.0.s8 %v1561
    %v1563 = vlaneseq
    %v1564 = vshrl.u32 %v1563, 7
    %v1565 = vsub.s32 %v1562, %v1564
    %v1566 = vrot.slane %v1460, %v1565
    %v1568 = vunpack.c.l.s4 1983009808
    %v1569 = vunpack.c.0.s8 %v1568
    %v1570 = vlaneseq
    %v1571 = vshrl.u32 %v1570, 7
    %v1572 = vsub.s32 %v1569, %v1571
    %v1573 = vrot.slane %v1559, %v1572
    %v1574 = vcombine.low %v1551, %v1566
    %v1575 = vcombine.high %v1551, %v1566
    %v1577 = vunpack.c.l.s4 1934713408
    %v1578 = vunpack.c.0.s8 %v1577
    %v1579 = vlaneseq
    %v1580 = vshrl.u32 %v1579, 7
    %v1581 = vsub.s32 %v1578, %v1580
    %v1582 = vrot.slane %v1574, %v1581
    %v1584 = vunpack.c.l.s4 1934713408
    %v1585 = vunpack.c.0.s8 %v1584
    %v1586 = vlaneseq
    %v1587 = vshrl.u32 %v1586, 7
    %v1588 = vsub.s32 %v1585, %v1587
    %v1589 = vrot.slane %v1575, %v1588
    %v1590 = vcombine.low %v1558, %v1573
    %v1591 = vcombine.high %v1558, %v1573
    %v1593 = vunpack.c.l.s4 1934713408
    %v1594 = vunpack.c.0.s8 %v1593
    %v1595 = vlaneseq
    %v1596 = vshrl.u32 %v1595, 7
    %v1597 = vsub.s32 %v1594, %v1596
    %v1598 = vrot.slane %v1590, %v1597
    %v1600 = vunpack.c.l.s4 1934713408
    %v1601 = vunpack.c.0.s8 %v1600
    %v1602 = vlaneseq
    %v1603 = vshrl.u32 %v1602, 7
    %v1604 = vsub.s32 %v1601, %v1603
    %v1605 = vrot.slane %v1591, %v1604
    %v1606 = vcombine.high %v1582, 0
    %v1607 = vcombine.high %v1589, 0
    %v1608 = vcombine.high %v1598, 0
    %v1609 = vcombine.high %v1605, 0
    %v1610 = vcombine.high %v1464, %v385
    %v1612 = vunpack.c.l.s4 1983009808
    %v1613 = vunpack.c.0.s8 %v1612
    %v1614 = vlaneseq
    %v1615 = vshrl.u32 %v1614, 7
    %v1616 = vsub.s32 %v1613, %v1615
    %v1617 = vrot.slane %v1464, %v1616
    %v1619 = vunpack.c.l.s4 1983009808
    %v1620 = vunpack.c.0.s8 %v1619
    %v1621 = vlaneseq
    %v1622 = vshrl.u32 %v1621, 7
    %v1623 = vsub.s32 %v1620, %v1622
    %v1624 = vrot.slane %v1610, %v1623
    %v1625 = vcombine.high %v1472, %v385
    %v1627 = vunpack.c.l.s4 1983009808
    %v1628 = vunpack.c.0.s8 %v1627
    %v1629 = vlaneseq
    %v1630 = vshrl.u32 %v1629, 7
    %v1631 = vsub.s32 %v1628, %v1630
    %v1632 = vrot.slane %v1472, %v1631
    %v1634 = vunpack.c.l.s4 1983009808
    %v1635 = vunpack.c.0.s8 %v1634
    %v1636 = vlaneseq
    %v1637 = vshrl.u32 %v1636, 7
    %v1638 = vsub.s32 %v1635, %v1637
    %v1639 = vrot.slane %v1625, %v1638
    %v1640 = vcombine.low %v1617, %v1632
    %v1641 = vcombine.high %v1617, %v1632
    %v1643 = vunpack.c.l.s4 1934713408
    %v1644 = vunpack.c.0.s8 %v1643
    %v1645 = vlaneseq
    %v1646 = vshrl.u32 %v1645, 7
    %v1647 = vsub.s32 %v1644, %v1646
    %v1648 = vrot.slane %v1640, %v1647
    %v1650 = vunpack.c.l.s4 1934713408
    %v1651 = vunpack.c.0.s8 %v1650
    %v1652 = vlaneseq
    %v1653 = vshrl.u32 %v1652, 7
    %v1654 = vsub.s32 %v1651, %v1653
    %v1655 = vrot.slane %v1641, %v1654
    %v1656 = vcombine.low %v1624, %v1639
    %v1657 = vcombine.high %v1624, %v1639
    %v1659 = vunpack.c.l.s4 1934713408
    %v1660 = vunpack.c.0.s8 %v1659
    %v1661 = vlaneseq
    %v1662 = vshrl.u32 %v1661, 7
    %v1663 = vsub.s32 %v1660, %v1662
    %v1664 = vrot.slane %v1656, %v1663
    %v1666 = vunpack.c.l.s4 1934713408
    %v1667 = vunpack.c.0.s8 %v1666
    %v1668 = vlaneseq
    %v1669 = vshrl.u32 %v1668, 7
    %v1670 = vsub.s32 %v1667, %v1669
    %v1671 = vrot.slane %v1657, %v1670
    %v1672 = vcombine.high %v1648, 0
    %v1673 = vcombine.high %v1655, 0
    %v1674 = vcombine.high %v1664, 0
    %v1675 = vcombine.high %v1671, 0
    %v1676 = vcombine.high %v1468, %v388
    %v1678 = vunpack.c.l.s4 1983009808
    %v1679 = vunpack.c.0.s8 %v1678
    %v1680 = vlaneseq
    %v1681 = vshrl.u32 %v1680, 7
    %v1682 = vsub.s32 %v1679, %v1681
    %v1683 = vrot.slane %v1468, %v1682
    %v1685 = vunpack.c.l.s4 1983009808
    %v1686 = vunpack.c.0.s8 %v1685
    %v1687 = vlaneseq
    %v1688 = vshrl.u32 %v1687, 7
    %v1689 = vsub.s32 %v1686, %v1688
    %v1690 = vrot.slane %v1676, %v1689
    %v1691 = vcombine.high %v1476, %v388
    %v1693 = vunpack.c.l.s4 1983009808
    %v1694 = vunpack.c.0.s8 %v1693
    %v1695 = vlaneseq
    %v1696 = vshrl.u32 %v1695, 7
    %v1697 = vsub.s32 %v1694, %v1696
    %v1698 = vrot.slane %v1476, %v1697
    %v1700 = vunpack.c.l.s4 1983009808
    %v1701 = vunpack.c.0.s8 %v1700
    %v1702 = vlaneseq
    %v1703 = vshrl.u32 %v1702, 7
    %v1704 = vsub.s32 %v1701, %v1703
    %v1705 = vrot.slane %v1691, %v1704
    %v1706 = vcombine.low %v1683, %v1698
    %v1707 = vcombine.high %v1683, %v1698
    %v1709 = vunpack.c.l.s4 1934713408
    %v1710 = vunpack.c.0.s8 %v1709
    %v1711 = vlaneseq
    %v1712 = vshrl.u32 %v1711, 7
    %v1713 = vsub.s32 %v1710, %v1712
    %v1714 = vrot.slane %v1706, %v1713
    %v1716 = vunpack.c.l.s4 1934713408
    %v1717 = vunpack.c.0.s8 %v1716
    %v1718 = vlaneseq
    %v1719 = vshrl.u32 %v1718, 7
    %v1720 = vsub.s32 %v1717, %v1719
    %v1721 = vrot.slane %v1707, %v1720
    %v1722 = vcombine.low %v1690, %v1705
    %v1723 = vcombine.high %v1690, %v1705
    %v1725 = vunpack.c.l.s4 1934713408
    %v1726 = vunpack.c.0.s8 %v1725
    %v1727 = vlaneseq
    %v1728 = vshrl.u32 %v1727, 7
    %v1729 = vsub.s32 %v1726, %v1728
    %v1730 = vrot.slane %v1722, %v1729
    %v1732 = vunpack.c.l.s4 1934713408
    %v1733 = vunpack.c.0.s8 %v1732
    %v1734 = vlaneseq
    %v1735 = vshrl.u32 %v1734, 7
    %v1736 = vsub.s32 %v1733, %v1735
    %v1737 = vrot.slane %v1723, %v1736
    %v1738 = vcombine.high %v1714, 0
    %v1739 = vcombine.high %v1721, 0
    %v1740 = vcombine.high %v1730, 0
    %v1741 = vcombine.high %v1737, 0
    %v1742 = vcombine.low %v1516, %v1523
    %v1744 = vunpack.c.l.s4 1983009808
    %v1745 = vunpack.c.0.s8 %v1744
    %v1746 = vlaneseq
    %v1747 = vshrl.u32 %v1746, 7
    %v1748 = vsub.s32 %v1745, %v1747
    %v1749 = vrot.slane %v1742, %v1748
    %v1750 = vcombine.low %v1540, %v1541
    %v1752 = vunpack.c.l.s4 1983009808
    %v1753 = vunpack.c.0.s8 %v1752
    %v1754 = vlaneseq
    %v1755 = vshrl.u32 %v1754, 7
    %v1756 = vsub.s32 %v1753, %v1755
    %v1757 = vrot.slane %v1750, %v1756
    %v1758 = vcombine.low %v1532, %v1539
    %v1760 = vunpack.c.l.s4 1983009808
    %v1761 = vunpack.c.0.s8 %v1760
    %v1762 = vlaneseq
    %v1763 = vshrl.u32 %v1762, 7
    %v1764 = vsub.s32 %v1761, %v1763
    %v1765 = vrot.slane %v1758, %v1764
    %v1766 = vcombine.low %v1542, %v1543
    %v1768 = vunpack.c.l.s4 1983009808
    %v1769 = vunpack.c.0.s8 %v1768
    %v1770 = vlaneseq
    %v1771 = vshrl.u32 %v1770, 7
    %v1772 = vsub.s32 %v1769, %v1771
    %v1773 = vrot.slane %v1766, %v1772
    %v1774 = vcombine.low %v1749, %v1757
    %v1776 = vunpack.c.l.s4 1934713408
    %v1777 = vunpack.c.0.s8 %v1776
    %v1778 = vlaneseq
    %v1779 = vshrl.u32 %v1778, 7
    %v1780 = vsub.s32 %v1777, %v1779
    %v1781 = vrot.slane %v1774, %v1780
    %v1782 = vcombine.low %v1765, %v1773
    %v1784 = vunpack.c.l.s4 1934713408
    %v1785 = vunpack.c.0.s8 %v1784
    %v1786 = vlaneseq
    %v1787 = vshrl.u32 %v1786, 7
    %v1788 = vsub.s32 %v1785, %v1787
    %v1789 = vrot.slane %v1782, %v1788
    %v1790 = vcombine.low %v1781, %v1789
    %v1791 = vcombine.high %v1781, %v1789
    %v1792 = vcombine.low %v1582, %v1589
    %v1794 = vunpack.c.l.s4 1983009808
    %v1795 = vunpack.c.0.s8 %v1794
    %v1796 = vlaneseq
    %v1797 = vshrl.u32 %v1796, 7
    %v1798 = vsub.s32 %v1795, %v1797
    %v1799 = vrot.slane %v1792, %v1798
    %v1800 = vcombine.low %v1606, %v1607
    %v1802 = vunpack.c.l.s4 1983009808
    %v1803 = vunpack.c.0.s8 %v1802
    %v1804 = vlaneseq
    %v1805 = vshrl.u32 %v1804, 7
    %v1806 = vsub.s32 %v1803, %v1805
    %v1807 = vrot.slane %v1800, %v1806
    %v1808 = vcombine.low %v1598, %v1605
    %v1810 = vunpack.c.l.s4 1983009808
    %v1811 = vunpack.c.0.s8 %v1810
    %v1812 = vlaneseq
    %v1813 = vshrl.u32 %v1812, 7
    %v1814 = vsub.s32 %v1811, %v1813
    %v1815 = vrot.slane %v1808, %v1814
    %v1816 = vcombine.low %v1608, %v1609
    %v1818 = vunpack.c.l.s4 1983009808
    %v1819 = vunpack.c.0.s8 %v1818
    %v1820 = vlaneseq
    %v1821 = vshrl.u32 %v1820, 7
    %v1822 = vsub.s32 %v1819, %v1821
    %v1823 = vrot.slane %v1816, %v1822
    %v1824 = vcombine.low %v1799, %v1807
    %v1826 = vunpack.c.l.s4 1934713408
    %v1827 = vunpack.c.0.s8 %v1826
    %v1828 = vlaneseq
    %v1829 = vshrl.u32 %v1828, 7
    %v1830 = vsub.s32 %v1827, %v1829
    %v1831 = vrot.slane %v1824, %v1830
    %v1832 = vcombine.low %v1815, %v1823
    %v1834 = vunpack.c.l.s4 1934713408
    %v1835 = vunpack.c.0.s8 %v1834
    %v1836 = vlaneseq
    %v1837 = vshrl.u32 %v1836, 7
    %v1838 = vsub.s32 %v1835, %v1837
    %v1839 = vrot.slane %v1832, %v1838
    %v1840 = vcombine.low %v1831, %v1839
    %v1841 = vcombine.high %v1831, %v1839
    %v1842 = vcombine.low %v1648, %v1655
    %v1844 = vunpack.c.l.s4 1983009808
    %v1845 = vunpack.c.0.s8 %v1844
    %v1846 = vlaneseq
    %v1847 = vshrl.u32 %v1846, 7
    %v1848 = vsub.s32 %v1845, %v1847
    %v1849 = vrot.slane %v1842, %v1848
    %v1850 = vcombine.low %v1672, %v1673
    %v1852 = vunpack.c.l.s4 1983009808
    %v1853 = vunpack.c.0.s8 %v1852
    %v1854 = vlaneseq
    %v1855 = vshrl.u32 %v1854, 7
    %v1856 = vsub.s32 %v1853, %v1855
    %v1857 = vrot.slane %v1850, %v1856
    %v1858 = vcombine.low %v1664, %v1671
    %v1860 = vunpack.c.l.s4 1983009808
    %v1861 = vunpack.c.0.s8 %v1860
    %v1862 = vlaneseq
    %v1863 = vshrl.u32 %v1862, 7
    %v1864 = vsub.s32 %v1861, %v1863
    %v1865 = vrot.slane %v1858, %v1864
    %v1866 = vcombine.low %v1674, %v1675
    %v1868 = vunpack.c.l.s4 1983009808
    %v1869 = vunpack.c.0.s8 %v1868
    %v1870 = vlaneseq
    %v1871 = vshrl.u32 %v1870, 7
    %v1872 = vsub.s32 %v1869, %v1871
    %v1873 = vrot.slane %v1866, %v1872
    %v1874 = vcombine.low %v1849, %v1857
    %v1876 = vunpack.c.l.s4 1934713408
    %v1877 = vunpack.c.0.s8 %v1876
    %v1878 = vlaneseq
    %v1879 = vshrl.u32 %v1878, 7
    %v1880 = vsub.s32 %v1877, %v1879
    %v1881 = vrot.slane %v1874, %v1880
    %v1882 = vcombine.low %v1865, %v1873
    %v1884 = vunpack.c.l.s4 1934713408
    %v1885 = vunpack.c.0.s8 %v1884
    %v1886 = vlaneseq
    %v1887 = vshrl.u32 %v1886, 7
    %v1888 = vsub.s32 %v1885, %v1887
    %v1889 = vrot.slane %v1882, %v1888
    %v1890 = vcombine.low %v1881, %v1889
    %v1891 = vcombine.high %v1881, %v1889
    %v1892 = vcombine.low %v1714, %v1721
    %v1894 = vunpack.c.l.s4 1983009808
    %v1895 = vunpack.c.0.s8 %v1894
    %v1896 = vlaneseq
    %v1897 = vshrl.u32 %v1896, 7
    %v1898 = vsub.s32 %v1895, %v1897
    %v1899 = vrot.slane %v1892, %v1898
    %v1900 = vcombine.low %v1738, %v1739
    %v1902 = vunpack.c.l.s4 1983009808
    %v1903 = vunpack.c.0.s8 %v1902
    %v1904 = vlaneseq
    %v1905 = vshrl.u32 %v1904, 7
    %v1906 = vsub.s32 %v1903, %v1905
    %v1907 = vrot.slane %v1900, %v1906
    %v1908 = vcombine.low %v1730, %v1737
    %v1910 = vunpack.c.l.s4 1983009808
    %v1911 = vunpack.c.0.s8 %v1910
    %v1912 = vlaneseq
    %v1913 = vshrl.u32 %v1912, 7
    %v1914 = vsub.s32 %v1911, %v1913
    %v1915 = vrot.slane %v1908, %v1914
    %v1916 = vcombine.low %v1740, %v1741
    %v1918 = vunpack.c.l.s4 1983009808
    %v1919 = vunpack.c.0.s8 %v1918
    %v1920 = vlaneseq
    %v1921 = vshrl.u32 %v1920, 7
    %v1922 = vsub.s32 %v1919, %v1921
    %v1923 = vrot.slane %v1916, %v1922
    %v1924 = vcombine.low %v1899, %v1907
    %v1926 = vunpack.c.l.s4 1934713408
    %v1927 = vunpack.c.0.s8 %v1926
    %v1928 = vlaneseq
    %v1929 = vshrl.u32 %v1928, 7
    %v1930 = vsub.s32 %v1927, %v1929
    %v1931 = vrot.slane %v1924, %v1930
    %v1932 = vcombine.low %v1915, %v1923
    %v1934 = vunpack.c.l.s4 1934713408
    %v1935 = vunpack.c.0.s8 %v1934
    %v1936 = vlaneseq
    %v1937 = vshrl.u32 %v1936, 7
    %v1938 = vsub.s32 %v1935, %v1937
    %v1939 = vrot.slane %v1932, %v1938
    %v1940 = vcombine.low %v1931, %v1939
    %v1941 = vcombine.high %v1931, %v1939
    %v1944 = vpack.i.b16 %v1840, %v1790
    %v1946 = vshrl.u32 %v1790, 16
    %v1947 = vshrl.u32 %v1840, 16
    %v1948 = vpack.i.b16 %v1947, %v1946
    %v1952 = vpack.i.b16 %v1841, %v1791
    %v1954 = vshrl.u32 %v1791, 16
    %v1955 = vshrl.u32 %v1841, 16
    %v1956 = vpack.i.b16 %v1955, %v1954
    %v1960 = vpack.i.b16 %v1940, %v1890
    %v1962 = vshrl.u32 %v1890, 16
    %v1963 = vshrl.u32 %v1940, 16
    %v1964 = vpack.i.b16 %v1963, %v1962
    %v1968 = vpack.i.b16 %v1941, %v1891
    %v1970 = vshrl.u32 %v1891, 16
    %v1971 = vshrl.u32 %v1941, 16
    %v1972 = vpack.i.b16 %v1971, %v1970
    %vm1974 = vcmask 261120
    %v1976 = vsel %vm1974, %v872, 0
    %v1979 = vsel %vm1974, %v1408, 0
    %1981 = vmatprep.subr.bf16.mxu0 0
    %1982 = vmatpush1.bf16.xpose.msra.mxu0 0
    %1983 = vmatprep.subr.bf16.mxu0 0
    %1984 = vmatpush1.bf16.xpose.msra.mxu0 0
    %1985 = vmatprep.subr.bf16.mxu0 0
    %1986 = vmatpush1.bf16.xpose.msra.mxu0 0
    %1987 = vmatprep.subr.bf16.mxu0 0
    %1988 = vmatpush1.bf16.xpose.msra.mxu0 0
    %1989 = vmatprep.subr.bf16.mxu0 0
    %1990 = vmatpush1.bf16.xpose.msra.mxu0 0
    %1991 = vmatprep.subr.bf16.mxu0 0
    %1992 = vmatpush1.bf16.xpose.msra.mxu0 0
    %1993 = vmatprep.subr.bf16.mxu0 0
    %1994 = vmatpush1.bf16.xpose.msra.mxu0 0
    %1995 = vmatprep.subr.bf16.mxu0 0
    %1996 = vmatpush1.bf16.xpose.msra.mxu0 %v1979
    %1997 = vmatprep.subr.bf16.mxu0 0
    %1998 = vmatpush2.bf16.xpose.msra.mxu0 0
    %1999 = vmatprep.subr.bf16.mxu0 0
    %2000 = vmatpush2.bf16.xpose.msra.mxu0 0
    %2001 = vmatprep.subr.bf16.mxu0 0
    %2002 = vmatpush2.bf16.xpose.msra.mxu0 0
    %2003 = vmatprep.subr.bf16.mxu0 0
    %2004 = vmatpush2.bf16.xpose.msra.mxu0 0
    %2005 = vmatprep.subr.bf16.mxu0 0
    %2006 = vmatpush2.bf16.xpose.msra.mxu0 0
    %2007 = vmatprep.subr.bf16.mxu0 0
    %2008 = vmatpush2.bf16.xpose.msra.mxu0 0
    %2009 = vmatprep.subr.bf16.mxu0 0
    %2010 = vmatpush2.bf16.xpose.msra.mxu0 0
    %2011 = vmatprep.subr.bf16.mxu0 0
    %2012 = vmatpush2.bf16.xpose.msra.mxu0 0
    %2013 = vmatprep.mubr.bf16.mxu0 0
    %2014 = vmatmul.mubr.bf16.gmra.mxu0 %v1976
    %v2015 = vpop.f32.mrf.mxu0
    %v2016 = vadd.f32 0.0, %v2015
    %v2017 = vpop.f32.mrf.mxu0
    %v2018 = vpop.f32.mrf.mxu0
    %v2019 = vadd.f32 0.0, %v2018
    %v2020 = vpop.f32.mrf.mxu0
    %2021 = vdwg.mxu0
    %v2023 = vsel %vm1974, %v884, 0
    %v2026 = vsel %vm1974, %v1420, 0
    %2028 = vmatprep.subr.bf16.mxu0 0
    %2029 = vmatpush1.bf16.xpose.msra.mxu0 0
    %2030 = vmatprep.subr.bf16.mxu0 0
    %2031 = vmatpush1.bf16.xpose.msra.mxu0 0
    %2032 = vmatprep.subr.bf16.mxu0 0
    %2033 = vmatpush1.bf16.xpose.msra.mxu0 0
    %2034 = vmatprep.subr.bf16.mxu0 0
    %2035 = vmatpush1.bf16.xpose.msra.mxu0 0
    %2036 = vmatprep.subr.bf16.mxu0 0
    %2037 = vmatpush1.bf16.xpose.msra.mxu0 0
    %2038 = vmatprep.subr.bf16.mxu0 0
    %2039 = vmatpush1.bf16.xpose.msra.mxu0 0
    %2040 = vmatprep.subr.bf16.mxu0 0
    %2041 = vmatpush1.bf16.xpose.msra.mxu0 0
    %2042 = vmatprep.subr.bf16.mxu0 0
    %2043 = vmatpush1.bf16.xpose.msra.mxu0 %v2026
    %2044 = vmatprep.subr.bf16.mxu0 0
    %2045 = vmatpush2.bf16.xpose.msra.mxu0 0
    %2046 = vmatprep.subr.bf16.mxu0 0
    %2047 = vmatpush2.bf16.xpose.msra.mxu0 0
    %2048 = vmatprep.subr.bf16.mxu0 0
    %2049 = vmatpush2.bf16.xpose.msra.mxu0 0
    %2050 = vmatprep.subr.bf16.mxu0 0
    %2051 = vmatpush2.bf16.xpose.msra.mxu0 0
    %2052 = vmatprep.subr.bf16.mxu0 0
    %2053 = vmatpush2.bf16.xpose.msra.mxu0 0
    %2054 = vmatprep.subr.bf16.mxu0 0
    %2055 = vmatpush2.bf16.xpose.msra.mxu0 0
    %2056 = vmatprep.subr.bf16.mxu0 0
    %2057 = vmatpush2.bf16.xpose.msra.mxu0 0
    %2058 = vmatprep.subr.bf16.mxu0 0
    %2059 = vmatpush2.bf16.xpose.msra.mxu0 0
    %2060 = vmatprep.mubr.bf16.mxu0 0
    %2061 = vmatmul.mubr.bf16.gmra.mxu0 %v2023
    %v2062 = vpop.f32.mrf.mxu0
    %v2063 = vadd.f32 0.0, %v2062
    %v2064 = vpop.f32.mrf.mxu0
    %v2065 = vpop.f32.mrf.mxu0
    %v2066 = vadd.f32 0.0, %v2065
    %v2067 = vpop.f32.mrf.mxu0
    %2068 = vdwg.mxu0
    %v2070 = vsel %vm1974, %v875, 0
    %v2073 = vsel %vm1974, %v1411, 0
    %2075 = vmatprep.subr.bf16.mxu0 0
    %2076 = vmatpush1.bf16.xpose.msra.mxu0 0
    %2077 = vmatprep.subr.bf16.mxu0 0
    %2078 = vmatpush1.bf16.xpose.msra.mxu0 0
    %2079 = vmatprep.subr.bf16.mxu0 0
    %2080 = vmatpush1.bf16.xpose.msra.mxu0 0
    %2081 = vmatprep.subr.bf16.mxu0 0
    %2082 = vmatpush1.bf16.xpose.msra.mxu0 0
    %2083 = vmatprep.subr.bf16.mxu0 0
    %2084 = vmatpush1.bf16.xpose.msra.mxu0 0
    %2085 = vmatprep.subr.bf16.mxu0 0
    %2086 = vmatpush1.bf16.xpose.msra.mxu0 0
    %2087 = vmatprep.subr.bf16.mxu0 0
    %2088 = vmatpush1.bf16.xpose.msra.mxu0 0
    %2089 = vmatprep.subr.bf16.mxu0 0
    %2090 = vmatpush1.bf16.xpose.msra.mxu0 %v2073
    %2091 = vmatprep.subr.bf16.mxu0 0
    %2092 = vmatpush2.bf16.xpose.msra.mxu0 0
    %2093 = vmatprep.subr.bf16.mxu0 0
    %2094 = vmatpush2.bf16.xpose.msra.mxu0 0
    %2095 = vmatprep.subr.bf16.mxu0 0
    %2096 = vmatpush2.bf16.xpose.msra.mxu0 0
    %2097 = vmatprep.subr.bf16.mxu0 0
    %2098 = vmatpush2.bf16.xpose.msra.mxu0 0
    %2099 = vmatprep.subr.bf16.mxu0 0
    %2100 = vmatpush2.bf16.xpose.msra.mxu0 0
    %2101 = vmatprep.subr.bf16.mxu0 0
    %2102 = vmatpush2.bf16.xpose.msra.mxu0 0
    %2103 = vmatprep.subr.bf16.mxu0 0
    %2104 = vmatpush2.bf16.xpose.msra.mxu0 0
    %2105 = vmatprep.subr.bf16.mxu0 0
    %2106 = vmatpush2.bf16.xpose.msra.mxu0 0
    %2107 = vmatprep.mubr.bf16.mxu0 0
    %2108 = vmatmul.mubr.bf16.gmra.mxu0 %v2070
    %v2109 = vpop.f32.mrf.mxu0
    %v2110 = vadd.f32 0.0, %v2109
    %v2111 = vpop.f32.mrf.mxu0
    %v2112 = vpop.f32.mrf.mxu0
    %v2113 = vadd.f32 0.0, %v2112
    %v2114 = vpop.f32.mrf.mxu0
    %2115 = vdwg.mxu0
    %v2117 = vsel %vm1974, %v887, 0
    %v2120 = vsel %vm1974, %v1423, 0
    %2122 = vmatprep.subr.bf16.mxu0 0
    %2123 = vmatpush1.bf16.xpose.msra.mxu0 0
    %2124 = vmatprep.subr.bf16.mxu0 0
    %2125 = vmatpush1.bf16.xpose.msra.mxu0 0
    %2126 = vmatprep.subr.bf16.mxu0 0
    %2127 = vmatpush1.bf16.xpose.msra.mxu0 0
    %2128 = vmatprep.subr.bf16.mxu0 0
    %2129 = vmatpush1.bf16.xpose.msra.mxu0 0
    %2130 = vmatprep.subr.bf16.mxu0 0
    %2131 = vmatpush1.bf16.xpose.msra.mxu0 0
    %2132 = vmatprep.subr.bf16.mxu0 0
    %2133 = vmatpush1.bf16.xpose.msra.mxu0 0
    %2134 = vmatprep.subr.bf16.mxu0 0
    %2135 = vmatpush1.bf16.xpose.msra.mxu0 0
    %2136 = vmatprep.subr.bf16.mxu0 0
    %2137 = vmatpush1.bf16.xpose.msra.mxu0 %v2120
    %2138 = vmatprep.subr.bf16.mxu0 0
    %2139 = vmatpush2.bf16.xpose.msra.mxu0 0
    %2140 = vmatprep.subr.bf16.mxu0 0
    %2141 = vmatpush2.bf16.xpose.msra.mxu0 0
    %2142 = vmatprep.subr.bf16.mxu0 0
    %2143 = vmatpush2.bf16.xpose.msra.mxu0 0
    %2144 = vmatprep.subr.bf16.mxu0 0
    %2145 = vmatpush2.bf16.xpose.msra.mxu0 0
    %2146 = vmatprep.subr.bf16.mxu0 0
    %2147 = vmatpush2.bf16.xpose.msra.mxu0 0
    %2148 = vmatprep.subr.bf16.mxu0 0
    %2149 = vmatpush2.bf16.xpose.msra.mxu0 0
    %2150 = vmatprep.subr.bf16.mxu0 0
    %2151 = vmatpush2.bf16.xpose.msra.mxu0 0
    %2152 = vmatprep.subr.bf16.mxu0 0
    %2153 = vmatpush2.bf16.xpose.msra.mxu0 0
    %2154 = vmatprep.mubr.bf16.mxu0 0
    %2155 = vmatmul.mubr.bf16.gmra.mxu0 %v2117
    %v2156 = vpop.f32.mrf.mxu0
    %v2157 = vadd.f32 0.0, %v2156
    %v2158 = vpop.f32.mrf.mxu0
    %v2159 = vpop.f32.mrf.mxu0
    %v2160 = vadd.f32 0.0, %v2159
    %v2161 = vpop.f32.mrf.mxu0
    %2162 = vdwg.mxu0
    %v2164 = vsel %vm1974, %v878, 0
    %v2167 = vsel %vm1974, %v1414, 0
    %2169 = vmatprep.subr.bf16.mxu0 0
    %2170 = vmatpush1.bf16.xpose.msra.mxu0 0
    %2171 = vmatprep.subr.bf16.mxu0 0
    %2172 = vmatpush1.bf16.xpose.msra.mxu0 0
    %2173 = vmatprep.subr.bf16.mxu0 0
    %2174 = vmatpush1.bf16.xpose.msra.mxu0 0
    %2175 = vmatprep.subr.bf16.mxu0 0
    %2176 = vmatpush1.bf16.xpose.msra.mxu0 0
    %2177 = vmatprep.subr.bf16.mxu0 0
    %2178 = vmatpush1.bf16.xpose.msra.mxu0 0
    %2179 = vmatprep.subr.bf16.mxu0 0
    %2180 = vmatpush1.bf16.xpose.msra.mxu0 0
    %2181 = vmatprep.subr.bf16.mxu0 0
    %2182 = vmatpush1.bf16.xpose.msra.mxu0 0
    %2183 = vmatprep.subr.bf16.mxu0 0
    %2184 = vmatpush1.bf16.xpose.msra.mxu0 %v2167
    %2185 = vmatprep.subr.bf16.mxu0 0
    %2186 = vmatpush2.bf16.xpose.msra.mxu0 0
    %2187 = vmatprep.subr.bf16.mxu0 0
    %2188 = vmatpush2.bf16.xpose.msra.mxu0 0
    %2189 = vmatprep.subr.bf16.mxu0 0
    %2190 = vmatpush2.bf16.xpose.msra.mxu0 0
    %2191 = vmatprep.subr.bf16.mxu0 0
    %2192 = vmatpush2.bf16.xpose.msra.mxu0 0
    %2193 = vmatprep.subr.bf16.mxu0 0
    %2194 = vmatpush2.bf16.xpose.msra.mxu0 0
    %2195 = vmatprep.subr.bf16.mxu0 0
    %2196 = vmatpush2.bf16.xpose.msra.mxu0 0
    %2197 = vmatprep.subr.bf16.mxu0 0
    %2198 = vmatpush2.bf16.xpose.msra.mxu0 0
    %2199 = vmatprep.subr.bf16.mxu0 0
    %2200 = vmatpush2.bf16.xpose.msra.mxu0 0
    %2201 = vmatprep.mubr.bf16.mxu0 0
    %2202 = vmatmul.mubr.bf16.gmra.mxu0 %v2164
    %v2203 = vpop.f32.mrf.mxu0
    %v2204 = vadd.f32 0.0, %v2203
    %v2205 = vpop.f32.mrf.mxu0
    %v2206 = vpop.f32.mrf.mxu0
    %v2207 = vadd.f32 0.0, %v2206
    %v2208 = vpop.f32.mrf.mxu0
    %2209 = vdwg.mxu0
    %v2211 = vsel %vm1974, %v890, 0
    %v2214 = vsel %vm1974, %v1426, 0
    %2216 = vmatprep.subr.bf16.mxu0 0
    %2217 = vmatpush1.bf16.xpose.msra.mxu0 0
    %2218 = vmatprep.subr.bf16.mxu0 0
    %2219 = vmatpush1.bf16.xpose.msra.mxu0 0
    %2220 = vmatprep.subr.bf16.mxu0 0
    %2221 = vmatpush1.bf16.xpose.msra.mxu0 0
    %2222 = vmatprep.subr.bf16.mxu0 0
    %2223 = vmatpush1.bf16.xpose.msra.mxu0 0
    %2224 = vmatprep.subr.bf16.mxu0 0
    %2225 = vmatpush1.bf16.xpose.msra.mxu0 0
    %2226 = vmatprep.subr.bf16.mxu0 0
    %2227 = vmatpush1.bf16.xpose.msra.mxu0 0
    %2228 = vmatprep.subr.bf16.mxu0 0
    %2229 = vmatpush1.bf16.xpose.msra.mxu0 0
    %2230 = vmatprep.subr.bf16.mxu0 0
    %2231 = vmatpush1.bf16.xpose.msra.mxu0 %v2214
    %2232 = vmatprep.subr.bf16.mxu0 0
    %2233 = vmatpush2.bf16.xpose.msra.mxu0 0
    %2234 = vmatprep.subr.bf16.mxu0 0
    %2235 = vmatpush2.bf16.xpose.msra.mxu0 0
    %2236 = vmatprep.subr.bf16.mxu0 0
    %2237 = vmatpush2.bf16.xpose.msra.mxu0 0
    %2238 = vmatprep.subr.bf16.mxu0 0
    %2239 = vmatpush2.bf16.xpose.msra.mxu0 0
    %2240 = vmatprep.subr.bf16.mxu0 0
    %2241 = vmatpush2.bf16.xpose.msra.mxu0 0
    %2242 = vmatprep.subr.bf16.mxu0 0
    %2243 = vmatpush2.bf16.xpose.msra.mxu0 0
    %2244 = vmatprep.subr.bf16.mxu0 0
    %2245 = vmatpush2.bf16.xpose.msra.mxu0 0
    %2246 = vmatprep.subr.bf16.mxu0 0
    %2247 = vmatpush2.bf16.xpose.msra.mxu0 0
    %2248 = vmatprep.mubr.bf16.mxu0 0
    %2249 = vmatmul.mubr.bf16.gmra.mxu0 %v2211
    %v2250 = vpop.f32.mrf.mxu0
    %v2251 = vadd.f32 0.0, %v2250
    %v2252 = vpop.f32.mrf.mxu0
    %v2253 = vpop.f32.mrf.mxu0
    %v2254 = vadd.f32 0.0, %v2253
    %v2255 = vpop.f32.mrf.mxu0
    %2256 = vdwg.mxu0
    %v2258 = vsel %vm1974, %v881, 0
    %v2261 = vsel %vm1974, %v1417, 0
    %2263 = vmatprep.subr.bf16.mxu0 0
    %2264 = vmatpush1.bf16.xpose.msra.mxu0 0
    %2265 = vmatprep.subr.bf16.mxu0 0
    %2266 = vmatpush1.bf16.xpose.msra.mxu0 0
    %2267 = vmatprep.subr.bf16.mxu0 0
    %2268 = vmatpush1.bf16.xpose.msra.mxu0 0
    %2269 = vmatprep.subr.bf16.mxu0 0
    %2270 = vmatpush1.bf16.xpose.msra.mxu0 0
    %2271 = vmatprep.subr.bf16.mxu0 0
    %2272 = vmatpush1.bf16.xpose.msra.mxu0 0
    %2273 = vmatprep.subr.bf16.mxu0 0
    %2274 = vmatpush1.bf16.xpose.msra.mxu0 0
    %2275 = vmatprep.subr.bf16.mxu0 0
    %2276 = vmatpush1.bf16.xpose.msra.mxu0 0
    %2277 = vmatprep.subr.bf16.mxu0 0
    %2278 = vmatpush1.bf16.xpose.msra.mxu0 %v2261
    %2279 = vmatprep.subr.bf16.mxu0 0
    %2280 = vmatpush2.bf16.xpose.msra.mxu0 0
    %2281 = vmatprep.subr.bf16.mxu0 0
    %2282 = vmatpush2.bf16.xpose.msra.mxu0 0
    %2283 = vmatprep.subr.bf16.mxu0 0
    %2284 = vmatpush2.bf16.xpose.msra.mxu0 0
    %2285 = vmatprep.subr.bf16.mxu0 0
    %2286 = vmatpush2.bf16.xpose.msra.mxu0 0
    %2287 = vmatprep.subr.bf16.mxu0 0
    %2288 = vmatpush2.bf16.xpose.msra.mxu0 0
    %2289 = vmatprep.subr.bf16.mxu0 0
    %2290 = vmatpush2.bf16.xpose.msra.mxu0 0
    %2291 = vmatprep.subr.bf16.mxu0 0
    %2292 = vmatpush2.bf16.xpose.msra.mxu0 0
    %2293 = vmatprep.subr.bf16.mxu0 0
    %2294 = vmatpush2.bf16.xpose.msra.mxu0 0
    %2295 = vmatprep.mubr.bf16.mxu0 0
    %2296 = vmatmul.mubr.bf16.gmra.mxu0 %v2258
    %v2297 = vpop.f32.mrf.mxu0
    %v2298 = vadd.f32 0.0, %v2297
    %v2299 = vpop.f32.mrf.mxu0
    %v2300 = vpop.f32.mrf.mxu0
    %v2301 = vadd.f32 0.0, %v2300
    %v2302 = vpop.f32.mrf.mxu0
    %2303 = vdwg.mxu0
    %v2305 = vsel %vm1974, %v893, 0
    %v2308 = vsel %vm1974, %v1429, 0
    %2310 = vmatprep.subr.bf16.mxu0 0
    %2311 = vmatpush1.bf16.xpose.msra.mxu0 0
    %2312 = vmatprep.subr.bf16.mxu0 0
    %2313 = vmatpush1.bf16.xpose.msra.mxu0 0
    %2314 = vmatprep.subr.bf16.mxu0 0
    %2315 = vmatpush1.bf16.xpose.msra.mxu0 0
    %2316 = vmatprep.subr.bf16.mxu0 0
    %2317 = vmatpush1.bf16.xpose.msra.mxu0 0
    %2318 = vmatprep.subr.bf16.mxu0 0
    %2319 = vmatpush1.bf16.xpose.msra.mxu0 0
    %2320 = vmatprep.subr.bf16.mxu0 0
    %2321 = vmatpush1.bf16.xpose.msra.mxu0 0
    %2322 = vmatprep.subr.bf16.mxu0 0
    %2323 = vmatpush1.bf16.xpose.msra.mxu0 0
    %2324 = vmatprep.subr.bf16.mxu0 0
    %2325 = vmatpush1.bf16.xpose.msra.mxu0 %v2308
    %2326 = vmatprep.subr.bf16.mxu0 0
    %2327 = vmatpush2.bf16.xpose.msra.mxu0 0
    %2328 = vmatprep.subr.bf16.mxu0 0
    %2329 = vmatpush2.bf16.xpose.msra.mxu0 0
    %2330 = vmatprep.subr.bf16.mxu0 0
    %2331 = vmatpush2.bf16.xpose.msra.mxu0 0
    %2332 = vmatprep.subr.bf16.mxu0 0
    %2333 = vmatpush2.bf16.xpose.msra.mxu0 0
    %2334 = vmatprep.subr.bf16.mxu0 0
    %2335 = vmatpush2.bf16.xpose.msra.mxu0 0
    %2336 = vmatprep.subr.bf16.mxu0 0
    %2337 = vmatpush2.bf16.xpose.msra.mxu0 0
    %2338 = vmatprep.subr.bf16.mxu0 0
    %2339 = vmatpush2.bf16.xpose.msra.mxu0 0
    %2340 = vmatprep.subr.bf16.mxu0 0
    %2341 = vmatpush2.bf16.xpose.msra.mxu0 0
    %2342 = vmatprep.mubr.bf16.mxu0 0
    %2343 = vmatmul.mubr.bf16.gmra.mxu0 %v2305
    %v2344 = vpop.f32.mrf.mxu0
    %v2345 = vadd.f32 0.0, %v2344
    %v2346 = vpop.f32.mrf.mxu0
    %v2347 = vpop.f32.mrf.mxu0
    %v2348 = vadd.f32 0.0, %v2347
    %v2349 = vpop.f32.mrf.mxu0
    %2350 = vdwg.mxu0
    %v2351 = vlaneseq
    %v2352 = vshrl.u32 %v2351, 7
    %v2353 = vadd.s32 %v2352, 8
    %v2354 = vlaneseq
    %v2355 = vand.u32 %v2354, 127
    %vm2356 = vcmp.ge.s32.totalorder %v2352, %v2355
    %vm2357 = vcmp.ge.s32.totalorder %v2353, %v2355
    %v2358 = vsel %vm2356, 1, 0
    %v2359 = vsel %vm2357, 1, 0
    %vm2360 = vcmp.eq.s32.totalorder %v2358, 1
    %vm2361 = vcmp.eq.s32.totalorder %v2359, 1
    %v2362 = vsel %vm2360, %v2016, -1e+30
    %v2363 = vsel %vm2361, %v2019, -1e+30
    %v2364 = vsel %vm2360, %v2063, -1e+30
    %v2365 = vsel %vm2361, %v2066, -1e+30
    %v2366 = vsel %vm2360, %v2110, -1e+30
    %v2367 = vsel %vm2361, %v2113, -1e+30
    %v2368 = vsel %vm2360, %v2157, -1e+30
    %v2369 = vsel %vm2361, %v2160, -1e+30
    %v2370 = vsel %vm2360, %v2204, -1e+30
    %v2371 = vsel %vm2361, %v2207, -1e+30
    %v2372 = vsel %vm2360, %v2251, -1e+30
    %v2373 = vsel %vm2361, %v2254, -1e+30
    %v2374 = vsel %vm2360, %v2298, -1e+30
    %v2375 = vsel %vm2361, %v2301, -1e+30
    %v2376 = vsel %vm2360, %v2345, -1e+30
    %v2377 = vsel %vm2361, %v2348, -1e+30
    %vm2378 = vcmask 130048
    %v2379 = vsel %vm2378, %v2362, -inf
    %2380 = vmax.xlane.f32.xlu0 %v2379
    %v2381 = vpop.xlane.xlu0 %2380
    %v2382 = vsel %vm2378, %v2363, -inf
    %2383 = vmax.xlane.f32.xlu0 %v2382
    %v2384 = vpop.xlane.xlu0 %2383
    %v2385 = vsel %vm2378, %v2364, -inf
    %2386 = vmax.xlane.f32.xlu0 %v2385
    %v2387 = vpop.xlane.xlu0 %2386
    %v2388 = vsel %vm2378, %v2365, -inf
    %2389 = vmax.xlane.f32.xlu0 %v2388
    %v2390 = vpop.xlane.xlu0 %2389
    %v2391 = vsel %vm2378, %v2366, -inf
    %2392 = vmax.xlane.f32.xlu0 %v2391
    %v2393 = vpop.xlane.xlu0 %2392
    %v2394 = vsel %vm2378, %v2367, -inf
    %2395 = vmax.xlane.f32.xlu0 %v2394
    %v2396 = vpop.xlane.xlu0 %2395
    %v2397 = vsel %vm2378, %v2368, -inf
    %2398 = vmax.xlane.f32.xlu0 %v2397
    %v2399 = vpop.xlane.xlu0 %2398
    %v2400 = vsel %vm2378, %v2369, -inf
    %2401 = vmax.xlane.f32.xlu0 %v2400
    %v2402 = vpop.xlane.xlu0 %2401
    %v2403 = vsel %vm2378, %v2370, -inf
    %2404 = vmax.xlane.f32.xlu0 %v2403
    %v2405 = vpop.xlane.xlu0 %2404
    %v2406 = vsel %vm2378, %v2371, -inf
    %2407 = vmax.xlane.f32.xlu0 %v2406
    %v2408 = vpop.xlane.xlu0 %2407
    %v2409 = vsel %vm2378, %v2372, -inf
    %2410 = vmax.xlane.f32.xlu0 %v2409
    %v2411 = vpop.xlane.xlu0 %2410
    %v2412 = vsel %vm2378, %v2373, -inf
    %2413 = vmax.xlane.f32.xlu0 %v2412
    %v2414 = vpop.xlane.xlu0 %2413
    %v2415 = vsel %vm2378, %v2374, -inf
    %2416 = vmax.xlane.f32.xlu0 %v2415
    %v2417 = vpop.xlane.xlu0 %2416
    %v2418 = vsel %vm2378, %v2375, -inf
    %2419 = vmax.xlane.f32.xlu0 %v2418
    %v2420 = vpop.xlane.xlu0 %2419
    %v2421 = vsel %vm2378, %v2376, -inf
    %2422 = vmax.xlane.f32.xlu0 %v2421
    %v2423 = vpop.xlane.xlu0 %2422
    %v2424 = vsel %vm2378, %v2377, -inf
    %2425 = vmax.xlane.f32.xlu0 %v2424
    %v2426 = vpop.xlane.xlu0 %2425
    %v2427 = vsub.f32 %v2362, %v2381
    %v2428 = vsub.f32 %v2363, %v2384
    %v2429 = vsub.f32 %v2364, %v2387
    %v2430 = vsub.f32 %v2365, %v2390
    %v2431 = vsub.f32 %v2366, %v2393
    %v2432 = vsub.f32 %v2367, %v2396
    %v2433 = vsub.f32 %v2368, %v2399
    %v2434 = vsub.f32 %v2369, %v2402
    %v2435 = vsub.f32 %v2370, %v2405
    %v2436 = vsub.f32 %v2371, %v2408
    %v2437 = vsub.f32 %v2372, %v2411
    %v2438 = vsub.f32 %v2373, %v2414
    %v2439 = vsub.f32 %v2374, %v2417
    %v2440 = vsub.f32 %v2375, %v2420
    %v2441 = vsub.f32 %v2376, %v2423
    %v2442 = vsub.f32 %v2377, %v2426
    %v2443 = vmul.f32 %v2427, 1.442695
    %v2444 = vpow.pop %v2443
    %v2445 = vmul.f32 %v2428, 1.442695
    %v2446 = vpow.pop %v2445
    %v2447 = vmul.f32 %v2429, 1.442695
    %v2448 = vpow.pop %v2447
    %v2449 = vmul.f32 %v2430, 1.442695
    %v2450 = vpow.pop %v2449
    %v2451 = vmul.f32 %v2431, 1.442695
    %v2452 = vpow.pop %v2451
    %v2453 = vmul.f32 %v2432, 1.442695
    %v2454 = vpow.pop %v2453
    %v2455 = vmul.f32 %v2433, 1.442695
    %v2456 = vpow.pop %v2455
    %v2457 = vmul.f32 %v2434, 1.442695
    %v2458 = vpow.pop %v2457
    %v2459 = vmul.f32 %v2435, 1.442695
    %v2460 = vpow.pop %v2459
    %v2461 = vmul.f32 %v2436, 1.442695
    %v2462 = vpow.pop %v2461
    %v2463 = vmul.f32 %v2437, 1.442695
    %v2464 = vpow.pop %v2463
    %v2465 = vmul.f32 %v2438, 1.442695
    %v2466 = vpow.pop %v2465
    %v2467 = vmul.f32 %v2439, 1.442695
    %v2468 = vpow.pop %v2467
    %v2469 = vmul.f32 %v2440, 1.442695
    %v2470 = vpow.pop %v2469
    %v2471 = vmul.f32 %v2441, 1.442695
    %v2472 = vpow.pop %v2471
    %v2473 = vmul.f32 %v2442, 1.442695
    %v2474 = vpow.pop %v2473
    %v2475 = vsel %vm2378, %v2444, 0.0
    %2476 = vadd.xlane.f32.xlu0 %v2475
    %v2477 = vpop.xlane.xlu0 %2476
    %v2478 = vsel %vm2378, %v2446, 0.0
    %2479 = vadd.xlane.f32.xlu0 %v2478
    %v2480 = vpop.xlane.xlu0 %2479
    %v2481 = vsel %vm2378, %v2448, 0.0
    %2482 = vadd.xlane.f32.xlu0 %v2481
    %v2483 = vpop.xlane.xlu0 %2482
    %v2484 = vsel %vm2378, %v2450, 0.0
    %2485 = vadd.xlane.f32.xlu0 %v2484
    %v2486 = vpop.xlane.xlu0 %2485
    %v2487 = vsel %vm2378, %v2452, 0.0
    %2488 = vadd.xlane.f32.xlu0 %v2487
    %v2489 = vpop.xlane.xlu0 %2488
    %v2490 = vsel %vm2378, %v2454, 0.0
    %2491 = vadd.xlane.f32.xlu0 %v2490
    %v2492 = vpop.xlane.xlu0 %2491
    %v2493 = vsel %vm2378, %v2456, 0.0
    %2494 = vadd.xlane.f32.xlu0 %v2493
    %v2495 = vpop.xlane.xlu0 %2494
    %v2496 = vsel %vm2378, %v2458, 0.0
    %2497 = vadd.xlane.f32.xlu0 %v2496
    %v2498 = vpop.xlane.xlu0 %2497
    %v2499 = vsel %vm2378, %v2460, 0.0
    %2500 = vadd.xlane.f32.xlu0 %v2499
    %v2501 = vpop.xlane.xlu0 %2500
    %v2502 = vsel %vm2378, %v2462, 0.0
    %2503 = vadd.xlane.f32.xlu0 %v2502
    %v2504 = vpop.xlane.xlu0 %2503
    %v2505 = vsel %vm2378, %v2464, 0.0
    %2506 = vadd.xlane.f32.xlu0 %v2505
    %v2507 = vpop.xlane.xlu0 %2506
    %v2508 = vsel %vm2378, %v2466, 0.0
    %2509 = vadd.xlane.f32.xlu0 %v2508
    %v2510 = vpop.xlane.xlu0 %2509
    %v2511 = vsel %vm2378, %v2468, 0.0
    %2512 = vadd.xlane.f32.xlu0 %v2511
    %v2513 = vpop.xlane.xlu0 %2512
    %v2514 = vsel %vm2378, %v2470, 0.0
    %2515 = vadd.xlane.f32.xlu0 %v2514
    %v2516 = vpop.xlane.xlu0 %2515
    %v2517 = vsel %vm2378, %v2472, 0.0
    %2518 = vadd.xlane.f32.xlu0 %v2517
    %v2519 = vpop.xlane.xlu0 %2518
    %v2520 = vsel %vm2378, %v2474, 0.0
    %2521 = vadd.xlane.f32.xlu0 %v2520
    %v2522 = vpop.xlane.xlu0 %2521
    %v2523 = vrcp.pop %v2477
    %v2524 = vrcp.pop %v2480
    %v2525 = vrcp.pop %v2483
    %v2526 = vrcp.pop %v2486
    %v2527 = vrcp.pop %v2489
    %v2528 = vrcp.pop %v2492
    %v2529 = vrcp.pop %v2495
    %v2530 = vrcp.pop %v2498
    %v2531 = vrcp.pop %v2501
    %v2532 = vrcp.pop %v2504
    %v2533 = vrcp.pop %v2507
    %v2534 = vrcp.pop %v2510
    %v2535 = vrcp.pop %v2513
    %v2536 = vrcp.pop %v2516
    %v2537 = vrcp.pop %v2519
    %v2538 = vrcp.pop %v2522
    %v2539 = vmul.f32 %v2444, %v2523
    %v2540 = vmul.f32 %v2446, %v2524
    %v2541 = vmul.f32 %v2448, %v2525
    %v2542 = vmul.f32 %v2450, %v2526
    %v2543 = vmul.f32 %v2452, %v2527
    %v2544 = vmul.f32 %v2454, %v2528
    %v2545 = vmul.f32 %v2456, %v2529
    %v2546 = vmul.f32 %v2458, %v2530
    %v2547 = vmul.f32 %v2460, %v2531
    %v2548 = vmul.f32 %v2462, %v2532
    %v2549 = vmul.f32 %v2464, %v2533
    %v2550 = vmul.f32 %v2466, %v2534
    %v2551 = vmul.f32 %v2468, %v2535
    %v2552 = vmul.f32 %v2470, %v2536
    %v2553 = vmul.f32 %v2472, %v2537
    %v2554 = vmul.f32 %v2474, %v2538
    %v2555 = vpack.c.bf16 %v2540, %v2539
    %v2556 = vpack.c.bf16 %v2542, %v2541
    %v2557 = vpack.c.bf16 %v2544, %v2543
    %v2558 = vpack.c.bf16 %v2546, %v2545
    %v2559 = vpack.c.bf16 %v2548, %v2547
    %v2560 = vpack.c.bf16 %v2550, %v2549
    %v2561 = vpack.c.bf16 %v2552, %v2551
    %v2562 = vpack.c.bf16 %v2554, %v2553
    %v2564 = vsel %vm2378, %v2555, 0
    %2566 = vmatprep.subr.bf16.mxu0 0
    %2567 = vmatpush1.bf16.msra.mxu0 0
    %2568 = vmatprep.subr.bf16.mxu0 0
    %2569 = vmatpush1.bf16.msra.mxu0 0
    %2570 = vmatprep.subr.bf16.mxu0 0
    %2571 = vmatpush1.bf16.msra.mxu0 0
    %2572 = vmatprep.subr.bf16.mxu0 0
    %2573 = vmatpush1.bf16.msra.mxu0 0
    %2574 = vmatprep.subr.bf16.mxu0 0
    %2575 = vmatpush1.bf16.msra.mxu0 0
    %2576 = vmatprep.subr.bf16.mxu0 0
    %2577 = vmatpush1.bf16.msra.mxu0 0
    %2578 = vmatprep.subr.bf16.mxu0 0
    %2579 = vmatpush1.bf16.msra.mxu0 0
    %2580 = vmatprep.subr.bf16.mxu0 0
    %2581 = vmatpush1.bf16.msra.mxu0 %v1944
    %2582 = vmatprep.subr.bf16.mxu0 0
    %2583 = vmatpush2.bf16.msra.mxu0 0
    %2584 = vmatprep.subr.bf16.mxu0 0
    %2585 = vmatpush2.bf16.msra.mxu0 0
    %2586 = vmatprep.subr.bf16.mxu0 0
    %2587 = vmatpush2.bf16.msra.mxu0 0
    %2588 = vmatprep.subr.bf16.mxu0 0
    %2589 = vmatpush2.bf16.msra.mxu0 0
    %2590 = vmatprep.subr.bf16.mxu0 0
    %2591 = vmatpush2.bf16.msra.mxu0 0
    %2592 = vmatprep.subr.bf16.mxu0 0
    %2593 = vmatpush2.bf16.msra.mxu0 0
    %2594 = vmatprep.subr.bf16.mxu0 0
    %2595 = vmatpush2.bf16.msra.mxu0 0
    %2596 = vmatprep.subr.bf16.mxu0 0
    %2597 = vmatpush2.bf16.msra.mxu0 0
    %2598 = vmatprep.mubr.bf16.mxu0 0
    %2599 = vmatmul.mubr.bf16.gmra.mxu0 %v2564
    %v2600 = vpop.f32.mrf.mxu0
    %v2601 = vadd.f32 0.0, %v2600
    %v2602 = vpop.f32.mrf.mxu0
    %v2603 = vpop.f32.mrf.mxu0
    %v2604 = vadd.f32 0.0, %v2603
    %v2605 = vpop.f32.mrf.mxu0
    %2606 = vdwg.mxu0
    %v2608 = vsel %vm2378, %v2556, 0
    %2610 = vmatprep.subr.bf16.mxu0 0
    %2611 = vmatpush1.bf16.msra.mxu0 0
    %2612 = vmatprep.subr.bf16.mxu0 0
    %2613 = vmatpush1.bf16.msra.mxu0 0
    %2614 = vmatprep.subr.bf16.mxu0 0
    %2615 = vmatpush1.bf16.msra.mxu0 0
    %2616 = vmatprep.subr.bf16.mxu0 0
    %2617 = vmatpush1.bf16.msra.mxu0 0
    %2618 = vmatprep.subr.bf16.mxu0 0
    %2619 = vmatpush1.bf16.msra.mxu0 0
    %2620 = vmatprep.subr.bf16.mxu0 0
    %2621 = vmatpush1.bf16.msra.mxu0 0
    %2622 = vmatprep.subr.bf16.mxu0 0
    %2623 = vmatpush1.bf16.msra.mxu0 0
    %2624 = vmatprep.subr.bf16.mxu0 0
    %2625 = vmatpush1.bf16.msra.mxu0 %v1960
    %2626 = vmatprep.subr.bf16.mxu0 0
    %2627 = vmatpush2.bf16.msra.mxu0 0
    %2628 = vmatprep.subr.bf16.mxu0 0
    %2629 = vmatpush2.bf16.msra.mxu0 0
    %2630 = vmatprep.subr.bf16.mxu0 0
    %2631 = vmatpush2.bf16.msra.mxu0 0
    %2632 = vmatprep.subr.bf16.mxu0 0
    %2633 = vmatpush2.bf16.msra.mxu0 0
    %2634 = vmatprep.subr.bf16.mxu0 0
    %2635 = vmatpush2.bf16.msra.mxu0 0
    %2636 = vmatprep.subr.bf16.mxu0 0
    %2637 = vmatpush2.bf16.msra.mxu0 0
    %2638 = vmatprep.subr.bf16.mxu0 0
    %2639 = vmatpush2.bf16.msra.mxu0 0
    %2640 = vmatprep.subr.bf16.mxu0 0
    %2641 = vmatpush2.bf16.msra.mxu0 0
    %2642 = vmatprep.mubr.bf16.mxu0 0
    %2643 = vmatmul.mubr.bf16.gmra.mxu0 %v2608
    %v2644 = vpop.f32.mrf.mxu0
    %v2645 = vadd.f32 0.0, %v2644
    %v2646 = vpop.f32.mrf.mxu0
    %v2647 = vpop.f32.mrf.mxu0
    %v2648 = vadd.f32 0.0, %v2647
    %v2649 = vpop.f32.mrf.mxu0
    %2650 = vdwg.mxu0
    %v2652 = vsel %vm2378, %v2557, 0
    %2654 = vmatprep.subr.bf16.mxu0 0
    %2655 = vmatpush1.bf16.msra.mxu0 0
    %2656 = vmatprep.subr.bf16.mxu0 0
    %2657 = vmatpush1.bf16.msra.mxu0 0
    %2658 = vmatprep.subr.bf16.mxu0 0
    %2659 = vmatpush1.bf16.msra.mxu0 0
    %2660 = vmatprep.subr.bf16.mxu0 0
    %2661 = vmatpush1.bf16.msra.mxu0 0
    %2662 = vmatprep.subr.bf16.mxu0 0
    %2663 = vmatpush1.bf16.msra.mxu0 0
    %2664 = vmatprep.subr.bf16.mxu0 0
    %2665 = vmatpush1.bf16.msra.mxu0 0
    %2666 = vmatprep.subr.bf16.mxu0 0
    %2667 = vmatpush1.bf16.msra.mxu0 0
    %2668 = vmatprep.subr.bf16.mxu0 0
    %2669 = vmatpush1.bf16.msra.mxu0 %v1948
    %2670 = vmatprep.subr.bf16.mxu0 0
    %2671 = vmatpush2.bf16.msra.mxu0 0
    %2672 = vmatprep.subr.bf16.mxu0 0
    %2673 = vmatpush2.bf16.msra.mxu0 0
    %2674 = vmatprep.subr.bf16.mxu0 0
    %2675 = vmatpush2.bf16.msra.mxu0 0
    %2676 = vmatprep.subr.bf16.mxu0 0
    %2677 = vmatpush2.bf16.msra.mxu0 0
    %2678 = vmatprep.subr.bf16.mxu0 0
    %2679 = vmatpush2.bf16.msra.mxu0 0
    %2680 = vmatprep.subr.bf16.mxu0 0
    %2681 = vmatpush2.bf16.msra.mxu0 0
    %2682 = vmatprep.subr.bf16.mxu0 0
    %2683 = vmatpush2.bf16.msra.mxu0 0
    %2684 = vmatprep.subr.bf16.mxu0 0
    %2685 = vmatpush2.bf16.msra.mxu0 0
    %2686 = vmatprep.mubr.bf16.mxu0 0
    %2687 = vmatmul.mubr.bf16.gmra.mxu0 %v2652
    %v2688 = vpop.f32.mrf.mxu0
    %v2689 = vadd.f32 0.0, %v2688
    %v2690 = vpop.f32.mrf.mxu0
    %v2691 = vpop.f32.mrf.mxu0
    %v2692 = vadd.f32 0.0, %v2691
    %v2693 = vpop.f32.mrf.mxu0
    %2694 = vdwg.mxu0
    %v2696 = vsel %vm2378, %v2558, 0
    %2698 = vmatprep.subr.bf16.mxu0 0
    %2699 = vmatpush1.bf16.msra.mxu0 0
    %2700 = vmatprep.subr.bf16.mxu0 0
    %2701 = vmatpush1.bf16.msra.mxu0 0
    %2702 = vmatprep.subr.bf16.mxu0 0
    %2703 = vmatpush1.bf16.msra.mxu0 0
    %2704 = vmatprep.subr.bf16.mxu0 0
    %2705 = vmatpush1.bf16.msra.mxu0 0
    %2706 = vmatprep.subr.bf16.mxu0 0
    %2707 = vmatpush1.bf16.msra.mxu0 0
    %2708 = vmatprep.subr.bf16.mxu0 0
    %2709 = vmatpush1.bf16.msra.mxu0 0
    %2710 = vmatprep.subr.bf16.mxu0 0
    %2711 = vmatpush1.bf16.msra.mxu0 0
    %2712 = vmatprep.subr.bf16.mxu0 0
    %2713 = vmatpush1.bf16.msra.mxu0 %v1964
    %2714 = vmatprep.subr.bf16.mxu0 0
    %2715 = vmatpush2.bf16.msra.mxu0 0
    %2716 = vmatprep.subr.bf16.mxu0 0
    %2717 = vmatpush2.bf16.msra.mxu0 0
    %2718 = vmatprep.subr.bf16.mxu0 0
    %2719 = vmatpush2.bf16.msra.mxu0 0
    %2720 = vmatprep.subr.bf16.mxu0 0
    %2721 = vmatpush2.bf16.msra.mxu0 0
    %2722 = vmatprep.subr.bf16.mxu0 0
    %2723 = vmatpush2.bf16.msra.mxu0 0
    %2724 = vmatprep.subr.bf16.mxu0 0
    %2725 = vmatpush2.bf16.msra.mxu0 0
    %2726 = vmatprep.subr.bf16.mxu0 0
    %2727 = vmatpush2.bf16.msra.mxu0 0
    %2728 = vmatprep.subr.bf16.mxu0 0
    %2729 = vmatpush2.bf16.msra.mxu0 0
    %2730 = vmatprep.mubr.bf16.mxu0 0
    %2731 = vmatmul.mubr.bf16.gmra.mxu0 %v2696
    %v2732 = vpop.f32.mrf.mxu0
    %v2733 = vadd.f32 0.0, %v2732
    %v2734 = vpop.f32.mrf.mxu0
    %v2735 = vpop.f32.mrf.mxu0
    %v2736 = vadd.f32 0.0, %v2735
    %v2737 = vpop.f32.mrf.mxu0
    %2738 = vdwg.mxu0
    %v2740 = vsel %vm2378, %v2559, 0
    %2742 = vmatprep.subr.bf16.mxu0 0
    %2743 = vmatpush1.bf16.msra.mxu0 0
    %2744 = vmatprep.subr.bf16.mxu0 0
    %2745 = vmatpush1.bf16.msra.mxu0 0
    %2746 = vmatprep.subr.bf16.mxu0 0
    %2747 = vmatpush1.bf16.msra.mxu0 0
    %2748 = vmatprep.subr.bf16.mxu0 0
    %2749 = vmatpush1.bf16.msra.mxu0 0
    %2750 = vmatprep.subr.bf16.mxu0 0
    %2751 = vmatpush1.bf16.msra.mxu0 0
    %2752 = vmatprep.subr.bf16.mxu0 0
    %2753 = vmatpush1.bf16.msra.mxu0 0
    %2754 = vmatprep.subr.bf16.mxu0 0
    %2755 = vmatpush1.bf16.msra.mxu0 0
    %2756 = vmatprep.subr.bf16.mxu0 0
    %2757 = vmatpush1.bf16.msra.mxu0 %v1952
    %2758 = vmatprep.subr.bf16.mxu0 0
    %2759 = vmatpush2.bf16.msra.mxu0 0
    %2760 = vmatprep.subr.bf16.mxu0 0
    %2761 = vmatpush2.bf16.msra.mxu0 0
    %2762 = vmatprep.subr.bf16.mxu0 0
    %2763 = vmatpush2.bf16.msra.mxu0 0
    %2764 = vmatprep.subr.bf16.mxu0 0
    %2765 = vmatpush2.bf16.msra.mxu0 0
    %2766 = vmatprep.subr.bf16.mxu0 0
    %2767 = vmatpush2.bf16.msra.mxu0 0
    %2768 = vmatprep.subr.bf16.mxu0 0
    %2769 = vmatpush2.bf16.msra.mxu0 0
    %2770 = vmatprep.subr.bf16.mxu0 0
    %2771 = vmatpush2.bf16.msra.mxu0 0
    %2772 = vmatprep.subr.bf16.mxu0 0
    %2773 = vmatpush2.bf16.msra.mxu0 0
    %2774 = vmatprep.mubr.bf16.mxu0 0
    %2775 = vmatmul.mubr.bf16.gmra.mxu0 %v2740
    %v2776 = vpop.f32.mrf.mxu0
    %v2777 = vadd.f32 0.0, %v2776
    %v2778 = vpop.f32.mrf.mxu0
    %v2779 = vpop.f32.mrf.mxu0
    %v2780 = vadd.f32 0.0, %v2779
    %v2781 = vpop.f32.mrf.mxu0
    %2782 = vdwg.mxu0
    %v2784 = vsel %vm2378, %v2560, 0
    %2786 = vmatprep.subr.bf16.mxu0 0
    %2787 = vmatpush1.bf16.msra.mxu0 0
    %2788 = vmatprep.subr.bf16.mxu0 0
    %2789 = vmatpush1.bf16.msra.mxu0 0
    %2790 = vmatprep.subr.bf16.mxu0 0
    %2791 = vmatpush1.bf16.msra.mxu0 0
    %2792 = vmatprep.subr.bf16.mxu0 0
    %2793 = vmatpush1.bf16.msra.mxu0 0
    %2794 = vmatprep.subr.bf16.mxu0 0
    %2795 = vmatpush1.bf16.msra.mxu0 0
    %2796 = vmatprep.subr.bf16.mxu0 0
    %2797 = vmatpush1.bf16.msra.mxu0 0
    %2798 = vmatprep.subr.bf16.mxu0 0
    %2799 = vmatpush1.bf16.msra.mxu0 0
    %2800 = vmatprep.subr.bf16.mxu0 0
    %2801 = vmatpush1.bf16.msra.mxu0 %v1968
    %2802 = vmatprep.subr.bf16.mxu0 0
    %2803 = vmatpush2.bf16.msra.mxu0 0
    %2804 = vmatprep.subr.bf16.mxu0 0
    %2805 = vmatpush2.bf16.msra.mxu0 0
    %2806 = vmatprep.subr.bf16.mxu0 0
    %2807 = vmatpush2.bf16.msra.mxu0 0
    %2808 = vmatprep.subr.bf16.mxu0 0
    %2809 = vmatpush2.bf16.msra.mxu0 0
    %2810 = vmatprep.subr.bf16.mxu0 0
    %2811 = vmatpush2.bf16.msra.mxu0 0
    %2812 = vmatprep.subr.bf16.mxu0 0
    %2813 = vmatpush2.bf16.msra.mxu0 0
    %2814 = vmatprep.subr.bf16.mxu0 0
    %2815 = vmatpush2.bf16.msra.mxu0 0
    %2816 = vmatprep.subr.bf16.mxu0 0
    %2817 = vmatpush2.bf16.msra.mxu0 0
    %2818 = vmatprep.mubr.bf16.mxu0 0
    %2819 = vmatmul.mubr.bf16.gmra.mxu0 %v2784
    %v2820 = vpop.f32.mrf.mxu0
    %v2821 = vadd.f32 0.0, %v2820
    %v2822 = vpop.f32.mrf.mxu0
    %v2823 = vpop.f32.mrf.mxu0
    %v2824 = vadd.f32 0.0, %v2823
    %v2825 = vpop.f32.mrf.mxu0
    %2826 = vdwg.mxu0
    %v2828 = vsel %vm2378, %v2561, 0
    %2830 = vmatprep.subr.bf16.mxu0 0
    %2831 = vmatpush1.bf16.msra.mxu0 0
    %2832 = vmatprep.subr.bf16.mxu0 0
    %2833 = vmatpush1.bf16.msra.mxu0 0
    %2834 = vmatprep.subr.bf16.mxu0 0
    %2835 = vmatpush1.bf16.msra.mxu0 0
    %2836 = vmatprep.subr.bf16.mxu0 0
    %2837 = vmatpush1.bf16.msra.mxu0 0
    %2838 = vmatprep.subr.bf16.mxu0 0
    %2839 = vmatpush1.bf16.msra.mxu0 0
    %2840 = vmatprep.subr.bf16.mxu0 0
    %2841 = vmatpush1.bf16.msra.mxu0 0
    %2842 = vmatprep.subr.bf16.mxu0 0
    %2843 = vmatpush1.bf16.msra.mxu0 0
    %2844 = vmatprep.subr.bf16.mxu0 0
    %2845 = vmatpush1.bf16.msra.mxu0 %v1956
    %2846 = vmatprep.subr.bf16.mxu0 0
    %2847 = vmatpush2.bf16.msra.mxu0 0
    %2848 = vmatprep.subr.bf16.mxu0 0
    %2849 = vmatpush2.bf16.msra.mxu0 0
    %2850 = vmatprep.subr.bf16.mxu0 0
    %2851 = vmatpush2.bf16.msra.mxu0 0
    %2852 = vmatprep.subr.bf16.mxu0 0
    %2853 = vmatpush2.bf16.msra.mxu0 0
    %2854 = vmatprep.subr.bf16.mxu0 0
    %2855 = vmatpush2.bf16.msra.mxu0 0
    %2856 = vmatprep.subr.bf16.mxu0 0
    %2857 = vmatpush2.bf16.msra.mxu0 0
    %2858 = vmatprep.subr.bf16.mxu0 0
    %2859 = vmatpush2.bf16.msra.mxu0 0
    %2860 = vmatprep.subr.bf16.mxu0 0
    %2861 = vmatpush2.bf16.msra.mxu0 0
    %2862 = vmatprep.mubr.bf16.mxu0 0
    %2863 = vmatmul.mubr.bf16.gmra.mxu0 %v2828
    %v2864 = vpop.f32.mrf.mxu0
    %v2865 = vadd.f32 0.0, %v2864
    %v2866 = vpop.f32.mrf.mxu0
    %v2867 = vpop.f32.mrf.mxu0
    %v2868 = vadd.f32 0.0, %v2867
    %v2869 = vpop.f32.mrf.mxu0
    %2870 = vdwg.mxu0
    %v2872 = vsel %vm2378, %v2562, 0
    %2874 = vmatprep.subr.bf16.mxu0 0
    %2875 = vmatpush1.bf16.msra.mxu0 0
    %2876 = vmatprep.subr.bf16.mxu0 0
    %2877 = vmatpush1.bf16.msra.mxu0 0
    %2878 = vmatprep.subr.bf16.mxu0 0
    %2879 = vmatpush1.bf16.msra.mxu0 0
    %2880 = vmatprep.subr.bf16.mxu0 0
    %2881 = vmatpush1.bf16.msra.mxu0 0
    %2882 = vmatprep.subr.bf16.mxu0 0
    %2883 = vmatpush1.bf16.msra.mxu0 0
    %2884 = vmatprep.subr.bf16.mxu0 0
    %2885 = vmatpush1.bf16.msra.mxu0 0
    %2886 = vmatprep.subr.bf16.mxu0 0
    %2887 = vmatpush1.bf16.msra.mxu0 0
    %2888 = vmatprep.subr.bf16.mxu0 0
    %2889 = vmatpush1.bf16.msra.mxu0 %v1972
    %2890 = vmatprep.subr.bf16.mxu0 0
    %2891 = vmatpush2.bf16.msra.mxu0 0
    %2892 = vmatprep.subr.bf16.mxu0 0
    %2893 = vmatpush2.bf16.msra.mxu0 0
    %2894 = vmatprep.subr.bf16.mxu0 0
    %2895 = vmatpush2.bf16.msra.mxu0 0
    %2896 = vmatprep.subr.bf16.mxu0 0
    %2897 = vmatpush2.bf16.msra.mxu0 0
    %2898 = vmatprep.subr.bf16.mxu0 0
    %2899 = vmatpush2.bf16.msra.mxu0 0
    %2900 = vmatprep.subr.bf16.mxu0 0
    %2901 = vmatpush2.bf16.msra.mxu0 0
    %2902 = vmatprep.subr.bf16.mxu0 0
    %2903 = vmatpush2.bf16.msra.mxu0 0
    %2904 = vmatprep.subr.bf16.mxu0 0
    %2905 = vmatpush2.bf16.msra.mxu0 0
    %2906 = vmatprep.mubr.bf16.mxu0 0
    %2907 = vmatmul.mubr.bf16.gmra.mxu0 %v2872
    %v2908 = vpop.f32.mrf.mxu0
    %v2909 = vadd.f32 0.0, %v2908
    %v2910 = vpop.f32.mrf.mxu0
    %v2911 = vpop.f32.mrf.mxu0
    %v2912 = vadd.f32 0.0, %v2911
    %v2913 = vpop.f32.mrf.mxu0
    %2914 = vdwg.mxu0
    %v2915 = vpack.c.bf16 %v2604, %v2601
    %v2916 = vpack.c.bf16 %v2648, %v2645
    %v2917 = vpack.c.bf16 %v2692, %v2689
    %v2918 = vpack.c.bf16 %v2736, %v2733
    %v2919 = vpack.c.bf16 %v2780, %v2777
    %v2920 = vpack.c.bf16 %v2824, %v2821
    %v2921 = vpack.c.bf16 %v2868, %v2865
    %v2922 = vpack.c.bf16 %v2912, %v2909
    %v2925 = vpack.i.b16 %v2917, %v2915
    %v2927 = vshrl.u32 %v2915, 16
    %v2928 = vshrl.u32 %v2917, 16
    %v2929 = vpack.i.b16 %v2928, %v2927
    %v2933 = vpack.i.b16 %v2921, %v2919
    %v2935 = vshrl.u32 %v2919, 16
    %v2936 = vshrl.u32 %v2921, 16
    %v2937 = vpack.i.b16 %v2936, %v2935
    %v2941 = vpack.i.b16 %v2918, %v2916
    %v2943 = vshrl.u32 %v2916, 16
    %v2944 = vshrl.u32 %v2918, 16
    %v2945 = vpack.i.b16 %v2944, %v2943
    %v2949 = vpack.i.b16 %v2922, %v2920
    %v2951 = vshrl.u32 %v2920, 16
    %v2952 = vshrl.u32 %v2922, 16
    %v2953 = vpack.i.b16 %v2952, %v2951
    %v2955 = vcombine.high %v2925, %v385
    %v2957 = vunpack.c.l.s4 1983009808
    %v2958 = vunpack.c.0.s8 %v2957
    %v2959 = vlaneseq
    %v2960 = vshrl.u32 %v2959, 7
    %v2961 = vsub.s32 %v2958, %v2960
    %v2962 = vrot.slane %v2925, %v2961
    %v2964 = vunpack.c.l.s4 1983009808
    %v2965 = vunpack.c.0.s8 %v2964
    %v2966 = vlaneseq
    %v2967 = vshrl.u32 %v2966, 7
    %v2968 = vsub.s32 %v2965, %v2967
    %v2969 = vrot.slane %v2955, %v2968
    %v2970 = vcombine.high %v2933, %v385
    %v2972 = vunpack.c.l.s4 1983009808
    %v2973 = vunpack.c.0.s8 %v2972
    %v2974 = vlaneseq
    %v2975 = vshrl.u32 %v2974, 7
    %v2976 = vsub.s32 %v2973, %v2975
    %v2977 = vrot.slane %v2933, %v2976
    %v2979 = vunpack.c.l.s4 1983009808
    %v2980 = vunpack.c.0.s8 %v2979
    %v2981 = vlaneseq
    %v2982 = vshrl.u32 %v2981, 7
    %v2983 = vsub.s32 %v2980, %v2982
    %v2984 = vrot.slane %v2970, %v2983
    %v2985 = vcombine.low %v2962, %v2977
    %v2986 = vcombine.high %v2962, %v2977
    %v2988 = vunpack.c.l.s4 1934713408
    %v2989 = vunpack.c.0.s8 %v2988
    %v2990 = vlaneseq
    %v2991 = vshrl.u32 %v2990, 7
    %v2992 = vsub.s32 %v2989, %v2991
    %v2993 = vrot.slane %v2985, %v2992
    %v2995 = vunpack.c.l.s4 1934713408
    %v2996 = vunpack.c.0.s8 %v2995
    %v2997 = vlaneseq
    %v2998 = vshrl.u32 %v2997, 7
    %v2999 = vsub.s32 %v2996, %v2998
    %v3000 = vrot.slane %v2986, %v2999
    %v3001 = vcombine.low %v2969, %v2984
    %v3002 = vcombine.high %v2969, %v2984
    %v3004 = vunpack.c.l.s4 1934713408
    %v3005 = vunpack.c.0.s8 %v3004
    %v3006 = vlaneseq
    %v3007 = vshrl.u32 %v3006, 7
    %v3008 = vsub.s32 %v3005, %v3007
    %v3009 = vrot.slane %v3001, %v3008
    %v3011 = vunpack.c.l.s4 1934713408
    %v3012 = vunpack.c.0.s8 %v3011
    %v3013 = vlaneseq
    %v3014 = vshrl.u32 %v3013, 7
    %v3015 = vsub.s32 %v3012, %v3014
    %v3016 = vrot.slane %v3002, %v3015
    %v3017 = vcombine.high %v2993, 0
    %v3018 = vcombine.high %v3000, 0
    %v3019 = vcombine.high %v3009, 0
    %v3020 = vcombine.high %v3016, 0
    %v3021 = vcombine.high %v2929, %v388
    %v3023 = vunpack.c.l.s4 1983009808
    %v3024 = vunpack.c.0.s8 %v3023
    %v3025 = vlaneseq
    %v3026 = vshrl.u32 %v3025, 7
    %v3027 = vsub.s32 %v3024, %v3026
    %v3028 = vrot.slane %v2929, %v3027
    %v3030 = vunpack.c.l.s4 1983009808
    %v3031 = vunpack.c.0.s8 %v3030
    %v3032 = vlaneseq
    %v3033 = vshrl.u32 %v3032, 7
    %v3034 = vsub.s32 %v3031, %v3033
    %v3035 = vrot.slane %v3021, %v3034
    %v3036 = vcombine.high %v2937, %v388
    %v3038 = vunpack.c.l.s4 1983009808
    %v3039 = vunpack.c.0.s8 %v3038
    %v3040 = vlaneseq
    %v3041 = vshrl.u32 %v3040, 7
    %v3042 = vsub.s32 %v3039, %v3041
    %v3043 = vrot.slane %v2937, %v3042
    %v3045 = vunpack.c.l.s4 1983009808
    %v3046 = vunpack.c.0.s8 %v3045
    %v3047 = vlaneseq
    %v3048 = vshrl.u32 %v3047, 7
    %v3049 = vsub.s32 %v3046, %v3048
    %v3050 = vrot.slane %v3036, %v3049
    %v3051 = vcombine.low %v3028, %v3043
    %v3052 = vcombine.high %v3028, %v3043
    %v3054 = vunpack.c.l.s4 1934713408
    %v3055 = vunpack.c.0.s8 %v3054
    %v3056 = vlaneseq
    %v3057 = vshrl.u32 %v3056, 7
    %v3058 = vsub.s32 %v3055, %v3057
    %v3059 = vrot.slane %v3051, %v3058
    %v3061 = vunpack.c.l.s4 1934713408
    %v3062 = vunpack.c.0.s8 %v3061
    %v3063 = vlaneseq
    %v3064 = vshrl.u32 %v3063, 7
    %v3065 = vsub.s32 %v3062, %v3064
    %v3066 = vrot.slane %v3052, %v3065
    %v3067 = vcombine.low %v3035, %v3050
    %v3068 = vcombine.high %v3035, %v3050
    %v3070 = vunpack.c.l.s4 1934713408
    %v3071 = vunpack.c.0.s8 %v3070
    %v3072 = vlaneseq
    %v3073 = vshrl.u32 %v3072, 7
    %v3074 = vsub.s32 %v3071, %v3073
    %v3075 = vrot.slane %v3067, %v3074
    %v3077 = vunpack.c.l.s4 1934713408
    %v3078 = vunpack.c.0.s8 %v3077
    %v3079 = vlaneseq
    %v3080 = vshrl.u32 %v3079, 7
    %v3081 = vsub.s32 %v3078, %v3080
    %v3082 = vrot.slane %v3068, %v3081
    %v3083 = vcombine.high %v3059, 0
    %v3084 = vcombine.high %v3066, 0
    %v3085 = vcombine.high %v3075, 0
    %v3086 = vcombine.high %v3082, 0
    %v3087 = vcombine.high %v2941, %v385
    %v3089 = vunpack.c.l.s4 1983009808
    %v3090 = vunpack.c.0.s8 %v3089
    %v3091 = vlaneseq
    %v3092 = vshrl.u32 %v3091, 7
    %v3093 = vsub.s32 %v3090, %v3092
    %v3094 = vrot.slane %v2941, %v3093
    %v3096 = vunpack.c.l.s4 1983009808
    %v3097 = vunpack.c.0.s8 %v3096
    %v3098 = vlaneseq
    %v3099 = vshrl.u32 %v3098, 7
    %v3100 = vsub.s32 %v3097, %v3099
    %v3101 = vrot.slane %v3087, %v3100
    %v3102 = vcombine.high %v2949, %v385
    %v3104 = vunpack.c.l.s4 1983009808
    %v3105 = vunpack.c.0.s8 %v3104
    %v3106 = vlaneseq
    %v3107 = vshrl.u32 %v3106, 7
    %v3108 = vsub.s32 %v3105, %v3107
    %v3109 = vrot.slane %v2949, %v3108
    %v3111 = vunpack.c.l.s4 1983009808
    %v3112 = vunpack.c.0.s8 %v3111
    %v3113 = vlaneseq
    %v3114 = vshrl.u32 %v3113, 7
    %v3115 = vsub.s32 %v3112, %v3114
    %v3116 = vrot.slane %v3102, %v3115
    %v3117 = vcombine.low %v3094, %v3109
    %v3118 = vcombine.high %v3094, %v3109
    %v3120 = vunpack.c.l.s4 1934713408
    %v3121 = vunpack.c.0.s8 %v3120
    %v3122 = vlaneseq
    %v3123 = vshrl.u32 %v3122, 7
    %v3124 = vsub.s32 %v3121, %v3123
    %v3125 = vrot.slane %v3117, %v3124
    %v3127 = vunpack.c.l.s4 1934713408
    %v3128 = vunpack.c.0.s8 %v3127
    %v3129 = vlaneseq
    %v3130 = vshrl.u32 %v3129, 7
    %v3131 = vsub.s32 %v3128, %v3130
    %v3132 = vrot.slane %v3118, %v3131
    %v3133 = vcombine.low %v3101, %v3116
    %v3134 = vcombine.high %v3101, %v3116
    %v3136 = vunpack.c.l.s4 1934713408
    %v3137 = vunpack.c.0.s8 %v3136
    %v3138 = vlaneseq
    %v3139 = vshrl.u32 %v3138, 7
    %v3140 = vsub.s32 %v3137, %v3139
    %v3141 = vrot.slane %v3133, %v3140
    %v3143 = vunpack.c.l.s4 1934713408
    %v3144 = vunpack.c.0.s8 %v3143
    %v3145 = vlaneseq
    %v3146 = vshrl.u32 %v3145, 7
    %v3147 = vsub.s32 %v3144, %v3146
    %v3148 = vrot.slane %v3134, %v3147
    %v3149 = vcombine.high %v3125, 0
    %v3150 = vcombine.high %v3132, 0
    %v3151 = vcombine.high %v3141, 0
    %v3152 = vcombine.high %v3148, 0
    %v3153 = vcombine.high %v2945, %v388
    %v3155 = vunpack.c.l.s4 1983009808
    %v3156 = vunpack.c.0.s8 %v3155
    %v3157 = vlaneseq
    %v3158 = vshrl.u32 %v3157, 7
    %v3159 = vsub.s32 %v3156, %v3158
    %v3160 = vrot.slane %v2945, %v3159
    %v3162 = vunpack.c.l.s4 1983009808
    %v3163 = vunpack.c.0.s8 %v3162
    %v3164 = vlaneseq
    %v3165 = vshrl.u32 %v3164, 7
    %v3166 = vsub.s32 %v3163, %v3165
    %v3167 = vrot.slane %v3153, %v3166
    %v3168 = vcombine.high %v2953, %v388
    %v3170 = vunpack.c.l.s4 1983009808
    %v3171 = vunpack.c.0.s8 %v3170
    %v3172 = vlaneseq
    %v3173 = vshrl.u32 %v3172, 7
    %v3174 = vsub.s32 %v3171, %v3173
    %v3175 = vrot.slane %v2953, %v3174
    %v3177 = vunpack.c.l.s4 1983009808
    %v3178 = vunpack.c.0.s8 %v3177
    %v3179 = vlaneseq
    %v3180 = vshrl.u32 %v3179, 7
    %v3181 = vsub.s32 %v3178, %v3180
    %v3182 = vrot.slane %v3168, %v3181
    %v3183 = vcombine.low %v3160, %v3175
    %v3184 = vcombine.high %v3160, %v3175
    %v3186 = vunpack.c.l.s4 1934713408
    %v3187 = vunpack.c.0.s8 %v3186
    %v3188 = vlaneseq
    %v3189 = vshrl.u32 %v3188, 7
    %v3190 = vsub.s32 %v3187, %v3189
    %v3191 = vrot.slane %v3183, %v3190
    %v3193 = vunpack.c.l.s4 1934713408
    %v3194 = vunpack.c.0.s8 %v3193
    %v3195 = vlaneseq
    %v3196 = vshrl.u32 %v3195, 7
    %v3197 = vsub.s32 %v3194, %v3196
    %v3198 = vrot.slane %v3184, %v3197
    %v3199 = vcombine.low %v3167, %v3182
    %v3200 = vcombine.high %v3167, %v3182
    %v3202 = vunpack.c.l.s4 1934713408
    %v3203 = vunpack.c.0.s8 %v3202
    %v3204 = vlaneseq
    %v3205 = vshrl.u32 %v3204, 7
    %v3206 = vsub.s32 %v3203, %v3205
    %v3207 = vrot.slane %v3199, %v3206
    %v3209 = vunpack.c.l.s4 1934713408
    %v3210 = vunpack.c.0.s8 %v3209
    %v3211 = vlaneseq
    %v3212 = vshrl.u32 %v3211, 7
    %v3213 = vsub.s32 %v3210, %v3212
    %v3214 = vrot.slane %v3200, %v3213
    %v3215 = vcombine.high %v3191, 0
    %v3216 = vcombine.high %v3198, 0
    %v3217 = vcombine.high %v3207, 0
    %v3218 = vcombine.high %v3214, 0
    %v3219 = vcombine.low %v2993, %v3000
    %v3221 = vunpack.c.l.s4 1983009808
    %v3222 = vunpack.c.0.s8 %v3221
    %v3223 = vlaneseq
    %v3224 = vshrl.u32 %v3223, 7
    %v3225 = vsub.s32 %v3222, %v3224
    %v3226 = vrot.slane %v3219, %v3225
    %v3227 = vcombine.low %v3017, %v3018
    %v3229 = vunpack.c.l.s4 1983009808
    %v3230 = vunpack.c.0.s8 %v3229
    %v3231 = vlaneseq
    %v3232 = vshrl.u32 %v3231, 7
    %v3233 = vsub.s32 %v3230, %v3232
    %v3234 = vrot.slane %v3227, %v3233
    %v3235 = vcombine.low %v3009, %v3016
    %v3237 = vunpack.c.l.s4 1983009808
    %v3238 = vunpack.c.0.s8 %v3237
    %v3239 = vlaneseq
    %v3240 = vshrl.u32 %v3239, 7
    %v3241 = vsub.s32 %v3238, %v3240
    %v3242 = vrot.slane %v3235, %v3241
    %v3243 = vcombine.low %v3019, %v3020
    %v3245 = vunpack.c.l.s4 1983009808
    %v3246 = vunpack.c.0.s8 %v3245
    %v3247 = vlaneseq
    %v3248 = vshrl.u32 %v3247, 7
    %v3249 = vsub.s32 %v3246, %v3248
    %v3250 = vrot.slane %v3243, %v3249
    %v3251 = vcombine.low %v3226, %v3234
    %v3253 = vunpack.c.l.s4 1934713408
    %v3254 = vunpack.c.0.s8 %v3253
    %v3255 = vlaneseq
    %v3256 = vshrl.u32 %v3255, 7
    %v3257 = vsub.s32 %v3254, %v3256
    %v3258 = vrot.slane %v3251, %v3257
    %v3259 = vcombine.low %v3242, %v3250
    %v3261 = vunpack.c.l.s4 1934713408
    %v3262 = vunpack.c.0.s8 %v3261
    %v3263 = vlaneseq
    %v3264 = vshrl.u32 %v3263, 7
    %v3265 = vsub.s32 %v3262, %v3264
    %v3266 = vrot.slane %v3259, %v3265
    %v3267 = vcombine.low %v3258, %v3266
    %v3268 = vcombine.high %v3258, %v3266
    %v3269 = vcombine.low %v3059, %v3066
    %v3271 = vunpack.c.l.s4 1983009808
    %v3272 = vunpack.c.0.s8 %v3271
    %v3273 = vlaneseq
    %v3274 = vshrl.u32 %v3273, 7
    %v3275 = vsub.s32 %v3272, %v3274
    %v3276 = vrot.slane %v3269, %v3275
    %v3277 = vcombine.low %v3083, %v3084
    %v3279 = vunpack.c.l.s4 1983009808
    %v3280 = vunpack.c.0.s8 %v3279
    %v3281 = vlaneseq
    %v3282 = vshrl.u32 %v3281, 7
    %v3283 = vsub.s32 %v3280, %v3282
    %v3284 = vrot.slane %v3277, %v3283
    %v3285 = vcombine.low %v3075, %v3082
    %v3287 = vunpack.c.l.s4 1983009808
    %v3288 = vunpack.c.0.s8 %v3287
    %v3289 = vlaneseq
    %v3290 = vshrl.u32 %v3289, 7
    %v3291 = vsub.s32 %v3288, %v3290
    %v3292 = vrot.slane %v3285, %v3291
    %v3293 = vcombine.low %v3085, %v3086
    %v3295 = vunpack.c.l.s4 1983009808
    %v3296 = vunpack.c.0.s8 %v3295
    %v3297 = vlaneseq
    %v3298 = vshrl.u32 %v3297, 7
    %v3299 = vsub.s32 %v3296, %v3298
    %v3300 = vrot.slane %v3293, %v3299
    %v3301 = vcombine.low %v3276, %v3284
    %v3303 = vunpack.c.l.s4 1934713408
    %v3304 = vunpack.c.0.s8 %v3303
    %v3305 = vlaneseq
    %v3306 = vshrl.u32 %v3305, 7
    %v3307 = vsub.s32 %v3304, %v3306
    %v3308 = vrot.slane %v3301, %v3307
    %v3309 = vcombine.low %v3292, %v3300
    %v3311 = vunpack.c.l.s4 1934713408
    %v3312 = vunpack.c.0.s8 %v3311
    %v3313 = vlaneseq
    %v3314 = vshrl.u32 %v3313, 7
    %v3315 = vsub.s32 %v3312, %v3314
    %v3316 = vrot.slane %v3309, %v3315
    %v3317 = vcombine.low %v3308, %v3316
    %v3318 = vcombine.high %v3308, %v3316
    %v3319 = vcombine.low %v3125, %v3132
    %v3321 = vunpack.c.l.s4 1983009808
    %v3322 = vunpack.c.0.s8 %v3321
    %v3323 = vlaneseq
    %v3324 = vshrl.u32 %v3323, 7
    %v3325 = vsub.s32 %v3322, %v3324
    %v3326 = vrot.slane %v3319, %v3325
    %v3327 = vcombine.low %v3149, %v3150
    %v3329 = vunpack.c.l.s4 1983009808
    %v3330 = vunpack.c.0.s8 %v3329
    %v3331 = vlaneseq
    %v3332 = vshrl.u32 %v3331, 7
    %v3333 = vsub.s32 %v3330, %v3332
    %v3334 = vrot.slane %v3327, %v3333
    %v3335 = vcombine.low %v3141, %v3148
    %v3337 = vunpack.c.l.s4 1983009808
    %v3338 = vunpack.c.0.s8 %v3337
    %v3339 = vlaneseq
    %v3340 = vshrl.u32 %v3339, 7
    %v3341 = vsub.s32 %v3338, %v3340
    %v3342 = vrot.slane %v3335, %v3341
    %v3343 = vcombine.low %v3151, %v3152
    %v3345 = vunpack.c.l.s4 1983009808
    %v3346 = vunpack.c.0.s8 %v3345
    %v3347 = vlaneseq
    %v3348 = vshrl.u32 %v3347, 7
    %v3349 = vsub.s32 %v3346, %v3348
    %v3350 = vrot.slane %v3343, %v3349
    %v3351 = vcombine.low %v3326, %v3334
    %v3353 = vunpack.c.l.s4 1934713408
    %v3354 = vunpack.c.0.s8 %v3353
    %v3355 = vlaneseq
    %v3356 = vshrl.u32 %v3355, 7
    %v3357 = vsub.s32 %v3354, %v3356
    %v3358 = vrot.slane %v3351, %v3357
    %v3359 = vcombine.low %v3342, %v3350
    %v3361 = vunpack.c.l.s4 1934713408
    %v3362 = vunpack.c.0.s8 %v3361
    %v3363 = vlaneseq
    %v3364 = vshrl.u32 %v3363, 7
    %v3365 = vsub.s32 %v3362, %v3364
    %v3366 = vrot.slane %v3359, %v3365
    %v3367 = vcombine.low %v3358, %v3366
    %v3368 = vcombine.high %v3358, %v3366
    %v3369 = vcombine.low %v3191, %v3198
    %v3371 = vunpack.c.l.s4 1983009808
    %v3372 = vunpack.c.0.s8 %v3371
    %v3373 = vlaneseq
    %v3374 = vshrl.u32 %v3373, 7
    %v3375 = vsub.s32 %v3372, %v3374
    %v3376 = vrot.slane %v3369, %v3375
    %v3377 = vcombine.low %v3215, %v3216
    %v3379 = vunpack.c.l.s4 1983009808
    %v3380 = vunpack.c.0.s8 %v3379
    %v3381 = vlaneseq
    %v3382 = vshrl.u32 %v3381, 7
    %v3383 = vsub.s32 %v3380, %v3382
    %v3384 = vrot.slane %v3377, %v3383
    %v3385 = vcombine.low %v3207, %v3214
    %v3387 = vunpack.c.l.s4 1983009808
    %v3388 = vunpack.c.0.s8 %v3387
    %v3389 = vlaneseq
    %v3390 = vshrl.u32 %v3389, 7
    %v3391 = vsub.s32 %v3388, %v3390
    %v3392 = vrot.slane %v3385, %v3391
    %v3393 = vcombine.low %v3217, %v3218
    %v3395 = vunpack.c.l.s4 1983009808
    %v3396 = vunpack.c.0.s8 %v3395
    %v3397 = vlaneseq
    %v3398 = vshrl.u32 %v3397, 7
    %v3399 = vsub.s32 %v3396, %v3398
    %v3400 = vrot.slane %v3393, %v3399
    %v3401 = vcombine.low %v3376, %v3384
    %v3403 = vunpack.c.l.s4 1934713408
    %v3404 = vunpack.c.0.s8 %v3403
    %v3405 = vlaneseq
    %v3406 = vshrl.u32 %v3405, 7
    %v3407 = vsub.s32 %v3404, %v3406
    %v3408 = vrot.slane %v3401, %v3407
    %v3409 = vcombine.low %v3392, %v3400
    %v3411 = vunpack.c.l.s4 1934713408
    %v3412 = vunpack.c.0.s8 %v3411
    %v3413 = vlaneseq
    %v3414 = vshrl.u32 %v3413, 7
    %v3415 = vsub.s32 %v3412, %v3414
    %v3416 = vrot.slane %v3409, %v3415
    %v3417 = vcombine.low %v3408, %v3416
    %v3418 = vcombine.high %v3408, %v3416
    %v3421 = vpack.i.b16 %v3317, %v3267
    %v3422 = vshrl.u32 %v3267, 16
    %v3423 = vshrl.u32 %v3317, 16
    %v3424 = vpack.i.b16 %v3423, %v3422
    %v3427 = vpack.i.b16 %v3318, %v3268
    %v3428 = vshrl.u32 %v3268, 16
    %v3429 = vshrl.u32 %v3318, 16
    %v3430 = vpack.i.b16 %v3429, %v3428
    %v3433 = vpack.i.b16 %v3417, %v3367
    %v3434 = vshrl.u32 %v3367, 16
    %v3435 = vshrl.u32 %v3417, 16
    %v3436 = vpack.i.b16 %v3435, %v3434
    %v3439 = vpack.i.b16 %v3418, %v3368
    %v3440 = vshrl.u32 %v3368, 16
    %v3441 = vshrl.u32 %v3418, 16
    %v3442 = vpack.i.b16 %v3441, %v3440
    %3443 = vrot.lane.b32.xlu0 %v3424, 32
    %v3444 = vpop.permute.xlu0 %3443
    %3445 = vrot.lane.b32.xlu0 %v3436, 32
    %v3446 = vpop.permute.xlu0 %3445
    %3447 = vrot.lane.b32.xlu0 %v3427, 64
    %v3448 = vpop.permute.xlu0 %3447
    %3449 = vrot.lane.b32.xlu0 %v3439, 64
    %v3450 = vpop.permute.xlu0 %3449
    %3451 = vrot.lane.b32.xlu0 %v3430, 96
    %v3452 = vpop.permute.xlu0 %3451
    %3453 = vrot.lane.b32.xlu0 %v3442, 96
    %v3454 = vpop.permute.xlu0 %3453
    %v3457 = vsel %vm1974, %v3421, %v3444
    %v3460 = vsel %vm1974, %v3433, %v3446
    %vm3461 = vcmask 523264
    %v3463 = vsel %vm3461, %v3457, %v3448
    %v3465 = vsel %vm3461, %v3460, %v3450
    %vm3466 = vcmask 785408
    %v3468 = vsel %vm3466, %v3463, %v3452
    %v3471 = vsel %vm3466, %v3465, %v3454
    %v3473 = vld [vmem:[#allocation7] sm:$0xf]
    %v3474 = vld [vmem:[#allocation7 + $0x4] sm:$0xf]
    %v3475 = vld [vmem:[#allocation7 + $0x8] sm:$0xf]
    %v3476 = vld [vmem:[#allocation7 + $0xc] sm:$0xf]
    %v3477 = vld [vmem:[#allocation7 + $0x10] sm:$0xf]
    %v3478 = vld [vmem:[#allocation7 + $0x14] sm:$0xf]
    %v3479 = vld [vmem:[#allocation7 + $0x18] sm:$0xf]
    %v3480 = vld [vmem:[#allocation7 + $0x1c] sm:$0xf]
    %v3481 = vld [vmem:[#allocation7 + $0x20] sm:$0xf]
    %v3482 = vld [vmem:[#allocation7 + $0x24] sm:$0xf]
    %v3483 = vld [vmem:[#allocation7 + $0x28] sm:$0xf]
    %v3484 = vld [vmem:[#allocation7 + $0x2c] sm:$0xf]
    %v3485 = vld [vmem:[#allocation7 + $0x30] sm:$0xf]
    %v3486 = vld [vmem:[#allocation7 + $0x34] sm:$0xf]
    %v3487 = vld [vmem:[#allocation7 + $0x38] sm:$0xf]
    %v3488 = vld [vmem:[#allocation7 + $0x3c] sm:$0xf]
    %v3489 = vld [vmem:[%s4] sm:$0x1]
    %v3491 = vlaneseq
    %v3492 = vshrl.u32 %v3491, 7
    %v3493 = vsub.s32 0, %v3492
    %v3494 = vrot.slane %v3489, %v3493
    %v3512 = vunpack.c.l.b16 %v3473
    %v3513 = vunpack.c.l.b16 %v3474
    %v3514 = vunpack.c.l.b16 %v3475
    %v3515 = vunpack.c.l.b16 %v3476
    %v3516 = vunpack.c.l.b16 %v3477
    %v3517 = vunpack.c.l.b16 %v3478
    %v3518 = vunpack.c.l.b16 %v3479
    %v3519 = vunpack.c.l.b16 %v3480
    %v3520 = vunpack.c.l.b16 %v3481
    %v3521 = vunpack.c.l.b16 %v3482
    %v3522 = vunpack.c.l.b16 %v3483
    %v3523 = vunpack.c.l.b16 %v3484
    %v3524 = vunpack.c.l.b16 %v3485
    %v3525 = vunpack.c.l.b16 %v3486
    %v3526 = vunpack.c.l.b16 %v3487
    %v3527 = vunpack.c.l.b16 %v3488
    %v3528 = vpack.c.b16 %v3513, %v3512
    %v3529 = vpack.c.b16 %v3515, %v3514
    %v3530 = vpack.c.b16 %v3517, %v3516
    %v3531 = vpack.c.b16 %v3519, %v3518
    %v3532 = vpack.c.b16 %v3521, %v3520
    %v3533 = vpack.c.b16 %v3523, %v3522
    %v3534 = vpack.c.b16 %v3525, %v3524
    %v3535 = vpack.c.b16 %v3527, %v3526
    %3544 = vmatprep.subr.bf16.mxu0 0
    %3545 = vmatpush1.bf16.msra.mxu0 %v3535
    %3546 = vmatprep.subr.bf16.mxu0 0
    %3547 = vmatpush1.bf16.msra.mxu0 %v3534
    %3548 = vmatprep.subr.bf16.mxu0 0
    %3549 = vmatpush1.bf16.msra.mxu0 %v3533
    %3550 = vmatprep.subr.bf16.mxu0 0
    %3551 = vmatpush1.bf16.msra.mxu0 %v3532
    %3552 = vmatprep.subr.bf16.mxu0 0
    %3553 = vmatpush1.bf16.msra.mxu0 %v3531
    %3554 = vmatprep.subr.bf16.mxu0 0
    %3555 = vmatpush1.bf16.msra.mxu0 %v3530
    %3556 = vmatprep.subr.bf16.mxu0 0
    %3557 = vmatpush1.bf16.msra.mxu0 %v3529
    %3558 = vmatprep.subr.bf16.mxu0 0
    %3559 = vmatpush1.bf16.msra.mxu0 %v3528
    %3560 = vmatprep.subr.bf16.mxu0 0
    %3561 = vmatpush2.bf16.msra.mxu0 0
    %3562 = vmatprep.subr.bf16.mxu0 0
    %3563 = vmatpush2.bf16.msra.mxu0 0
    %3564 = vmatprep.subr.bf16.mxu0 0
    %3565 = vmatpush2.bf16.msra.mxu0 0
    %3566 = vmatprep.subr.bf16.mxu0 0
    %3567 = vmatpush2.bf16.msra.mxu0 0
    %3568 = vmatprep.subr.bf16.mxu0 0
    %3569 = vmatpush2.bf16.msra.mxu0 0
    %3570 = vmatprep.subr.bf16.mxu0 0
    %3571 = vmatpush2.bf16.msra.mxu0 0
    %3572 = vmatprep.subr.bf16.mxu0 0
    %3573 = vmatpush2.bf16.msra.mxu0 0
    %3574 = vmatprep.subr.bf16.mxu0 0
    %3575 = vmatpush2.bf16.msra.mxu0 0
    %3576 = vmatprep.mubr.bf16.mxu0 0
    %3577 = vmatmul.mubr.bf16.gmra.mxu0 %v3468
    %v3578 = vpop.f32.mrf.mxu0
    %v3579 = vadd.f32 %v3494, %v3578
    %v3580 = vpop.f32.mrf.mxu0
    %v3581 = vpop.f32.mrf.mxu0
    %v3582 = vadd.f32 %v3494, %v3581
    %v3583 = vpop.f32.mrf.mxu0
    %3584 = vmatprep.mubr.bf16.mxu0 0
    %3585 = vmatmul.mubr.bf16.gmra.mxu0 %v3471
    %v3586 = vpop.f32.mrf.mxu0
    %v3587 = vadd.f32 %v3494, %v3586
    %v3588 = vpop.f32.mrf.mxu0
    %v3589 = vpop.f32.mrf.mxu0
    %v3590 = vadd.f32 %v3494, %v3589
    %v3591 = vpop.f32.mrf.mxu0
    %3592 = vdwg.mxu0
    %3593 = vst [vmem:[#allocation8] sm:$0xff] %v3579
    %3594 = vst [vmem:[#allocation8 + $0x8] sm:$0xff] %v3582
    %3595 = vst [vmem:[#allocation8 + $0x10] sm:$0xff] %v3587
    %3596 = vst [vmem:[#allocation8 + $0x18] sm:$0xff] %v3590
    // Predicated region
    $region34: #{mha_pallas.1} parent=1 // pred_check
      _
    $region35: #{mha_pallas.1} parent=1 // pred_check_branch
      %3598 = sbr.rel (0) target = $region37
    $region36: #{mha_pallas.1} parent=1 // pred_region
      %s3600 = ssub.s32 512, 512
      %3601 = vsyncadd [#allocation4], %s3600
      %s3602 = sshll.u32 [#allocation8], 4
      %s3603 = int_to_ptr.vmem [resolvable:$true] %s3602
      %3608 = dma.vmem_to_hbm [thread:$0]  %s3603, 512, %s5, [#allocation4], 128, 128, 8
    $region37: #{mha_pallas.1} parent=1 // pred_fallthru
      _
    // Predicated region
    $region38: #{mha_pallas.1} parent=1 // pred_check
      _
    $region39: #{mha_pallas.1} parent=1 // pred_check_branch
      %3610 = sbr.rel (0) target = $region41
    $region40: #{mha_pallas.1} parent=1 // pred_region
      %3611 = dma.done [#allocation4], 512
    $region41: #{mha_pallas.1} parent=1 // pred_fallthru
      _
    %3612 = vsyncpa [#allocation3], 1
    %3613 = vsyncpa [#allocation6], 1
    %3614 = vsyncpa [#allocation4], 1

</llo_original>
